<compile_context>
chip_gen: v5e
topology: v5e:2x2
jax: 0.10.0
libtpu: 0.0.40
codegen_flags: <defaults>
</compile_context>

<pallas_src>
import functools
import math

import jax
import jax.numpy as jnp
from jax import lax
from jax.experimental import pallas as pl
from jax.experimental.pallas import tpu as pltpu


# ----------------------------- Pallas kernels -----------------------------

def _conv_tile_kernel(x_ref, w_ref, scale_ref, bias_ref, o_ref, *,
                      stride, tile_h, wout):
    """One tile of output rows of a 3x3 conv (+ folded BN + ReLU).

    x_ref:     (1, s*s, tile_h + e, wout + e, Cin) stride-phase decomposed,
               zero-padded input slab (e = 2 // s extra halo rows/cols).
    w_ref:     (9, Cin, Cout)  tap-major conv weights (tap = kh*3 + kw).
    scale_ref: (1, Cout)       folded BN scale.
    bias_ref:  (1, Cout)       folded BN bias.
    o_ref:     (1, tile_h, wout, Cout)
    """
    s = stride
    cin = x_ref.shape[-1]
    cout = o_ref.shape[-1]
    m = tile_h * wout

    # Load each stride-phase of the slab once; every tap is a contiguous
    # static window of one of these phases (no strided access in-kernel).
    phases = [x_ref[0, p] for p in range(s * s)]

    acc = jnp.zeros((m, cout), jnp.float32)
    for kh in range(3):
        for kw in range(3):
            p = (kh % s) * s + (kw % s)
            oh, ow = kh // s, kw // s
            patch = phases[p][oh:oh + tile_h, ow:ow + wout, :]   # (tile_h, wout, Cin)
            acc = acc + jnp.dot(patch.reshape(m, cin), w_ref[kh * 3 + kw],
                                preferred_element_type=jnp.float32)

    y = jnp.maximum(acc * scale_ref[...] + bias_ref[...], 0.0)   # BN + ReLU in f32
    o_ref[0] = y.reshape(tile_h, wout, cout).astype(o_ref.dtype)


def _deconv_tile_kernel(x_ref, w_ref, scale_ref, bias_ref, o_ref):
    """ConvTranspose2d (kernel_size == stride == s) + BN + ReLU, one row tile.

    x_ref:     (tile_r, W, Cin)
    w_ref:     (Cin, s*s*Cout)     column t*Cout + o holds tap t, out-chan o
    scale_ref: (1, s*s*Cout)       BN scale tiled per tap (lane-dense epilogue)
    bias_ref:  (1, s*s*Cout)
    o_ref:     (tile_r, W, s*s*Cout)   pixel shuffle happens in glue
    """
    tile_r, wdim, cin = x_ref.shape
    cexp = o_ref.shape[-1]
    x = x_ref[...].reshape(tile_r * wdim, cin)
    y = jnp.dot(x, w_ref[...], preferred_element_type=jnp.float32)
    y = jnp.maximum(y * scale_ref[...] + bias_ref[...], 0.0)
    o_ref[...] = y.reshape(tile_r, wdim, cexp).astype(o_ref.dtype)


# ------------------------------ wrappers ------------------------------

# Per-tile (single-buffered) input budget; with double buffering and weights
# this stays far under the 64 MiB v7x / 128 MiB v5e/v6e VMEM capacities.
_VMEM_TILE_BUDGET = 2 << 20


def conv3x3_bn_relu(x, w, scale, bias, stride):
    """x: (N, H, W, Cin) NHWC; w: (9, Cin, Cout). ZeroPad2d(1) + Conv3x3(stride) + BN + ReLU."""
    n, h, wdim, cin = x.shape
    cout = w.shape[-1]
    s = stride
    hout = (h + 2 - 3) // s + 1
    wout = (wdim + 2 - 3) // s + 1
    e = 2 // s                       # extra phase rows/cols the 3x3 taps reach into
    n_phase = s * s
    w_ph = wout + e                  # phase-space width

    # Output-row tile sized against the VMEM budget.
    bytes_per_row = n_phase * w_ph * cin * x.dtype.itemsize
    tile_h = max(1, min(hout, _VMEM_TILE_BUDGET // max(1, bytes_per_row)))
    num_t = pl.cdiv(hout, tile_h)

    # Pad: ZeroPad2d(1) plus whatever the phase decomposition / rounded-up
    # row tiling needs (extra zero rows are never read by legitimate outputs).
    hp = s * (num_t * tile_h + e)
    wp = s * w_ph
    xp = jnp.pad(x, ((0, 0), (1, hp - h - 1), (1, wp - wdim - 1), (0, 0)))

    # Stride-phase decomposition: pure relayout, no data duplication.
    #   x_ph[n, bh*s + bw, i, j, c] == xp[n, i*s + bh, j*s + bw, c]
    x_ph = xp.reshape(n, hp // s, s, wp // s, s, cin)
    x_ph = x_ph.transpose(0, 2, 4, 1, 3, 5).reshape(n, n_phase, hp // s, w_ph, cin)

    # Overlapping row slabs (only an e-row halo is duplicated per tile).
    if num_t > 1:
        x_ph = jnp.stack(
            [x_ph[:, :, t * tile_h:t * tile_h + tile_h + e] for t in range(num_t)],
            axis=1).reshape(n * num_t, n_phase, tile_h + e, w_ph, cin)

    r = n * num_t
    out = pl.pallas_call(
        functools.partial(_conv_tile_kernel, stride=s, tile_h=tile_h, wout=wout),
        out_shape=jax.ShapeDtypeStruct((r, tile_h, wout, cout), x.dtype),
        grid=(r,),
        in_specs=[
            pl.BlockSpec((1, n_phase, tile_h + e, w_ph, cin),
                         lambda i: (i, 0, 0, 0, 0)),
            pl.BlockSpec((9, cin, cout), lambda i: (0, 0, 0)),
            pl.BlockSpec((1, cout), lambda i: (0, 0)),
            pl.BlockSpec((1, cout), lambda i: (0, 0)),
        ],
        out_specs=pl.BlockSpec((1, tile_h, wout, cout), lambda i: (i, 0, 0, 0)),
        compiler_params=pltpu.CompilerParams(dimension_semantics=("parallel",)),
    )(x_ph, w, scale, bias)
    return out.reshape(n, num_t * tile_h, wout, cout)[:, :hout]


def deconv_bn_relu(x, wt, scale, bias, stride):
    """ConvTranspose2d with kernel_size == stride == s, no padding, bias=False.
    x: (N, H, W, Cin) NHWC; wt: (s*s, Cin, Cout) with tap index kh*s + kw."""
    n, h, wdim, cin = x.shape
    cout = wt.shape[-1]
    s = stride
    nt = s * s
    cexp = nt * cout

    # Lane-dense fused weights / epilogue params: one GEMM emits all s*s taps.
    w2 = wt.transpose(1, 0, 2).reshape(cin, cexp)        # [c, t*Cout + o] = wt[t, c, o]
    scale2 = jnp.tile(scale, (1, nt))
    bias2 = jnp.tile(bias, (1, nt))

    r = n * h
    bytes_per_row = wdim * cin * x.dtype.itemsize
    tile_r = max(1, min(r, _VMEM_TILE_BUDGET // max(1, bytes_per_row)))
    num_t = pl.cdiv(r, tile_r)
    rpad = num_t * tile_r

    xr = x.reshape(r, wdim, cin)
    if rpad > r:
        xr = jnp.pad(xr, ((0, rpad - r), (0, 0), (0, 0)))

    out = pl.pallas_call(
        _deconv_tile_kernel,
        out_shape=jax.ShapeDtypeStruct((rpad, wdim, cexp), x.dtype),
        grid=(num_t,),
        in_specs=[
            pl.BlockSpec((tile_r, wdim, cin), lambda i: (i, 0, 0)),
            pl.BlockSpec((cin, cexp), lambda i: (0, 0)),
            pl.BlockSpec((1, cexp), lambda i: (0, 0)),
            pl.BlockSpec((1, cexp), lambda i: (0, 0)),
        ],
        out_specs=pl.BlockSpec((tile_r, wdim, cexp), lambda i: (i, 0, 0)),
        compiler_params=pltpu.CompilerParams(dimension_semantics=("parallel",)),
    )(xr, w2, scale2, bias2)

    # Pixel-shuffle reassembly (pure layout glue): tap (kh,kw) -> (h*s+kh, w*s+kw).
    out = out[:r].reshape(n, h, wdim, s, s, cout)
    out = out.transpose(0, 1, 3, 2, 4, 5).reshape(n, h * s, wdim * s, cout)
    return out


# ------------------------- parameters (synthetic) -------------------------

def fold_bn(gamma, beta, mean, var, eps=1e-3):
    # BN folded to inference-mode per-channel affine (eps=0.001 as in norm_cfg).
    scale = gamma / jnp.sqrt(var + eps)
    bias = beta - mean * scale
    return scale.reshape(1, -1), bias.reshape(1, -1)


# Small RPN config consistent with the module's constraints:
LAYER_NUMS = [1, 1]
DS_LAYER_STRIDES = [1, 2]
DS_NUM_FILTERS = [8, 16]
US_LAYER_STRIDES = [1, 2]
US_NUM_FILTERS = [8, 8]
NUM_INPUT_FEATURES = 4
# upsample_start_idx = len(LAYER_NUMS) - len(US_LAYER_STRIDES) = 0
# must_equal_list check: 1/1 == 2/(1*2) == 1  -> OK


def init_rpn_params(key):
    in_filters = [NUM_INPUT_FEATURES] + DS_NUM_FILTERS[:-1]
    blocks, deblocks = [], []
    for i, ln in enumerate(LAYER_NUMS):
        specs = [(in_filters[i], DS_NUM_FILTERS[i], DS_LAYER_STRIDES[i])]
        specs += [(DS_NUM_FILTERS[i], DS_NUM_FILTERS[i], 1)] * ln
        layers = []
        for (ci, co, st) in specs:
            key, kw_, kg, kb, km, kv = jax.random.split(key, 6)
            w = jax.random.normal(kw_, (9, ci, co), jnp.float32) / math.sqrt(9 * ci)
            gamma = jax.random.uniform(kg, (co,), jnp.float32, 0.8, 1.2)
            beta = jax.random.normal(kb, (co,), jnp.float32) * 0.05
            mean = jax.random.normal(km, (co,), jnp.float32) * 0.05
            var = jax.random.uniform(kv, (co,), jnp.float32, 0.8, 1.2)
            scale, bias = fold_bn(gamma, beta, mean, var)
            layers.append(dict(w=w, scale=scale, bias=bias, stride=st))
        blocks.append(layers)

        s = US_LAYER_STRIDES[i]
        uc = US_NUM_FILTERS[i]
        ci = DS_NUM_FILTERS[i]
        key, kw_, kg, kb, km, kv = jax.random.split(key, 6)
        wt = jax.random.normal(kw_, (s * s, ci, uc), jnp.float32) / math.sqrt(s * s * ci)
        gamma = jax.random.uniform(kg, (uc,), jnp.float32, 0.8, 1.2)
        beta = jax.random.normal(kb, (uc,), jnp.float32) * 0.05
        mean = jax.random.normal(km, (uc,), jnp.float32) * 0.05
        var = jax.random.uniform(kv, (uc,), jnp.float32, 0.8, 1.2)
        scale, bias = fold_bn(gamma, beta, mean, var)
        deblocks.append(dict(w=wt, scale=scale, bias=bias, stride=s))
    return blocks, deblocks


# ------------------------------ RPN forward --------------------------------

def rpn_forward(x_nchw, blocks, deblocks):
    x = jnp.transpose(x_nchw, (0, 2, 3, 1))            # NCHW -> NHWC
    ups = []
    for i, layers in enumerate(blocks):
        for layer in layers:
            x = conv3x3_bn_relu(x, layer["w"], layer["scale"], layer["bias"],
                                layer["stride"])
        db = deblocks[i]                                 # upsample_start_idx == 0
        ups.append(deconv_bn_relu(x, db["w"], db["scale"], db["bias"], db["stride"]))
    out = jnp.concatenate(ups, axis=-1)                  # cat along channels
    return jnp.transpose(out, (0, 3, 1, 2))              # NHWC -> NCHW


# ------------------------- pure-JAX reference (check) ----------------------

def _conv_ref(x, w, scale, bias, stride):
    w_hwio = w.reshape(3, 3, w.shape[1], w.shape[2])
    y = lax.conv_general_dilated(
        x, w_hwio, (stride, stride), [(1, 1), (1, 1)],
        dimension_numbers=("NHWC", "HWIO", "NHWC"),
        precision=lax.Precision.HIGHEST)
    return jnp.maximum(y * scale.reshape(1, 1, 1, -1) + bias.reshape(1, 1, 1, -1), 0.0)


def _deconv_ref(x, wt, scale, bias, s):
    n, h, wdim, cin = x.shape
    cout = wt.shape[-1]
    y = jnp.einsum("nhwc,tcd->nhwtd", x, wt, precision=lax.Precision.HIGHEST)
    y = y.reshape(n, h, wdim, s, s, cout).transpose(0, 1, 3, 2, 4, 5)
    y = y.reshape(n, h * s, wdim * s, cout)
    return jnp.maximum(y * scale.reshape(1, 1, 1, -1) + bias.reshape(1, 1, 1, -1), 0.0)


def rpn_forward_ref(x_nchw, blocks, deblocks):
    x = jnp.transpose(x_nchw, (0, 2, 3, 1))
    ups = []
    for i, layers in enumerate(blocks):
        for layer in layers:
            x = _conv_ref(x, layer["w"], layer["scale"], layer["bias"], layer["stride"])
        db = deblocks[i]
        ups.append(_deconv_ref(x, db["w"], db["scale"], db["bias"], db["stride"]))
    out = jnp.concatenate(ups, axis=-1)
    return jnp.transpose(out, (0, 3, 1, 2))


# ---------------------------------- main ------------------------------------

if __name__ == "__main__":
    key = jax.random.PRNGKey(0)
    pkey, xkey = jax.random.split(key)
    blocks, deblocks = init_rpn_params(pkey)

    # PyTorch-style NCHW input: batch=2, C=num_input_features=4, H=W=16
    x = jax.random.normal(xkey, (2, 4, 16, 16), jnp.float32)

    out = rpn_forward(x, blocks, deblocks)
    out = jax.block_until_ready(out)

    assert out.shape == (2, sum(US_NUM_FILTERS), 16, 16), out.shape

    ref = rpn_forward_ref(x, blocks, deblocks)
    if not jnp.allclose(out, ref, atol=3e-2, rtol=3e-2):
        raise AssertionError("Pallas RPN output mismatch vs pure-JAX reference")

    print("KERNEL_OK")
</pallas_src>

<mosaic_0001>
module attributes {stable_mosaic.version = 11 : i64} {
  func.func @_conv_tile_kernel(%arg0: i32, %arg1: memref<1x1x18x18x4xf32, #tpu.memory_space<vmem>>, %arg2: memref<9x4x8xf32, #tpu.memory_space<vmem>>, %arg3: memref<1x8xf32, #tpu.memory_space<vmem>>, %arg4: memref<1x8xf32, #tpu.memory_space<vmem>>, %arg5: memref<1x16x16x8xf32, #tpu.memory_space<vmem>>) attributes {dimension_semantics = [#tpu.dimension_semantics<parallel>], iteration_bounds = array<i64: 2>, scalar_prefetch = 0 : i64, scratch_operands = 0 : i64, tpu.core_type = #tpu.core_type<tc>, window_params = [{transform_indices = @transform_0, window_bounds = array<i64: 1, 1, 18, 18, 4>}, {pipeline_mode = #tpu.pipeline_mode<synchronous>, transform_indices = @transform_1, window_bounds = array<i64: 9, 4, 8>}, {pipeline_mode = #tpu.pipeline_mode<synchronous>, transform_indices = @transform_2, window_bounds = array<i64: 1, 8>}, {pipeline_mode = #tpu.pipeline_mode<synchronous>, transform_indices = @transform_3, window_bounds = array<i64: 1, 8>}, {transform_indices = @transform_4, window_bounds = array<i64: 1, 16, 16, 8>}]} {
    %c0 = arith.constant 0 : index
    %c0_0 = arith.constant 0 : index
    %c0_1 = arith.constant 0 : index
    %c0_2 = arith.constant 0 : index
    %c0_3 = arith.constant 0 : index
    %0 = vector.load %arg1[%c0, %c0_0, %c0_1, %c0_2, %c0_3] : memref<1x1x18x18x4xf32, #tpu.memory_space<vmem>>, vector<1x1x18x18x4xf32>
    %1 = vector.shape_cast %0 : vector<1x1x18x18x4xf32> to vector<18x18x4xf32>
    %cst = arith.constant 0.000000e+00 : f32
    %2 = vector.broadcast %cst : f32 to vector<256x8xf32>
    %3 = vector.extract_strided_slice %1 {offsets = [0, 0, 0], sizes = [16, 16, 4], strides = [1, 1, 1]} : vector<18x18x4xf32> to vector<16x16x4xf32>
    %4 = vector.shape_cast %3 : vector<16x16x4xf32> to vector<256x4xf32>
    %c0_4 = arith.constant 0 : index
    %c0_5 = arith.constant 0 : index
    %c0_6 = arith.constant 0 : index
    %5 = vector.load %arg2[%c0_4, %c0_5, %c0_6] : memref<9x4x8xf32, #tpu.memory_space<vmem>>, vector<1x4x8xf32>
    %6 = vector.shape_cast %5 : vector<1x4x8xf32> to vector<4x8xf32>
    %cst_7 = arith.constant dense<0.000000e+00> : vector<256x8xf32>
    %7 = tpu.matmul %4, %6, %cst_7 {dimension_numbers = #tpu.dot_dimension_numbers<[1], [0], [0], [1], [0, 0, 1, 1], [], []>} : vector<256x4xf32>, vector<4x8xf32>, vector<256x8xf32> -> vector<256x8xf32>
    %8 = arith.addf %2, %7 : vector<256x8xf32>
    %9 = vector.extract_strided_slice %1 {offsets = [0, 1, 0], sizes = [16, 16, 4], strides = [1, 1, 1]} : vector<18x18x4xf32> to vector<16x16x4xf32>
    %10 = vector.shape_cast %9 : vector<16x16x4xf32> to vector<256x4xf32>
    %c1 = arith.constant 1 : index
    %c0_8 = arith.constant 0 : index
    %c0_9 = arith.constant 0 : index
    %11 = vector.load %arg2[%c1, %c0_8, %c0_9] : memref<9x4x8xf32, #tpu.memory_space<vmem>>, vector<1x4x8xf32>
    %12 = vector.shape_cast %11 : vector<1x4x8xf32> to vector<4x8xf32>
    %cst_10 = arith.constant dense<0.000000e+00> : vector<256x8xf32>
    %13 = tpu.matmul %10, %12, %cst_10 {dimension_numbers = #tpu.dot_dimension_numbers<[1], [0], [0], [1], [0, 0, 1, 1], [], []>} : vector<256x4xf32>, vector<4x8xf32>, vector<256x8xf32> -> vector<256x8xf32>
    %14 = arith.addf %8, %13 : vector<256x8xf32>
    %15 = vector.extract_strided_slice %1 {offsets = [0, 2, 0], sizes = [16, 16, 4], strides = [1, 1, 1]} : vector<18x18x4xf32> to vector<16x16x4xf32>
    %16 = vector.shape_cast %15 : vector<16x16x4xf32> to vector<256x4xf32>
    %c2 = arith.constant 2 : index
    %c0_11 = arith.constant 0 : index
    %c0_12 = arith.constant 0 : index
    %17 = vector.load %arg2[%c2, %c0_11, %c0_12] : memref<9x4x8xf32, #tpu.memory_space<vmem>>, vector<1x4x8xf32>
    %18 = vector.shape_cast %17 : vector<1x4x8xf32> to vector<4x8xf32>
    %cst_13 = arith.constant dense<0.000000e+00> : vector<256x8xf32>
    %19 = tpu.matmul %16, %18, %cst_13 {dimension_numbers = #tpu.dot_dimension_numbers<[1], [0], [0], [1], [0, 0, 1, 1], [], []>} : vector<256x4xf32>, vector<4x8xf32>, vector<256x8xf32> -> vector<256x8xf32>
    %20 = arith.addf %14, %19 : vector<256x8xf32>
    %21 = vector.extract_strided_slice %1 {offsets = [1, 0, 0], sizes = [16, 16, 4], strides = [1, 1, 1]} : vector<18x18x4xf32> to vector<16x16x4xf32>
    %22 = vector.shape_cast %21 : vector<16x16x4xf32> to vector<256x4xf32>
    %c3 = arith.constant 3 : index
    %c0_14 = arith.constant 0 : index
    %c0_15 = arith.constant 0 : index
    %23 = vector.load %arg2[%c3, %c0_14, %c0_15] : memref<9x4x8xf32, #tpu.memory_space<vmem>>, vector<1x4x8xf32>
    %24 = vector.shape_cast %23 : vector<1x4x8xf32> to vector<4x8xf32>
    %cst_16 = arith.constant dense<0.000000e+00> : vector<256x8xf32>
    %25 = tpu.matmul %22, %24, %cst_16 {dimension_numbers = #tpu.dot_dimension_numbers<[1], [0], [0], [1], [0, 0, 1, 1], [], []>} : vector<256x4xf32>, vector<4x8xf32>, vector<256x8xf32> -> vector<256x8xf32>
    %26 = arith.addf %20, %25 : vector<256x8xf32>
    %27 = vector.extract_strided_slice %1 {offsets = [1, 1, 0], sizes = [16, 16, 4], strides = [1, 1, 1]} : vector<18x18x4xf32> to vector<16x16x4xf32>
    %28 = vector.shape_cast %27 : vector<16x16x4xf32> to vector<256x4xf32>
    %c4 = arith.constant 4 : index
    %c0_17 = arith.constant 0 : index
    %c0_18 = arith.constant 0 : index
    %29 = vector.load %arg2[%c4, %c0_17, %c0_18] : memref<9x4x8xf32, #tpu.memory_space<vmem>>, vector<1x4x8xf32>
    %30 = vector.shape_cast %29 : vector<1x4x8xf32> to vector<4x8xf32>
    %cst_19 = arith.constant dense<0.000000e+00> : vector<256x8xf32>
    %31 = tpu.matmul %28, %30, %cst_19 {dimension_numbers = #tpu.dot_dimension_numbers<[1], [0], [0], [1], [0, 0, 1, 1], [], []>} : vector<256x4xf32>, vector<4x8xf32>, vector<256x8xf32> -> vector<256x8xf32>
    %32 = arith.addf %26, %31 : vector<256x8xf32>
    %33 = vector.extract_strided_slice %1 {offsets = [1, 2, 0], sizes = [16, 16, 4], strides = [1, 1, 1]} : vector<18x18x4xf32> to vector<16x16x4xf32>
    %34 = vector.shape_cast %33 : vector<16x16x4xf32> to vector<256x4xf32>
    %c5 = arith.constant 5 : index
    %c0_20 = arith.constant 0 : index
    %c0_21 = arith.constant 0 : index
    %35 = vector.load %arg2[%c5, %c0_20, %c0_21] : memref<9x4x8xf32, #tpu.memory_space<vmem>>, vector<1x4x8xf32>
    %36 = vector.shape_cast %35 : vector<1x4x8xf32> to vector<4x8xf32>
    %cst_22 = arith.constant dense<0.000000e+00> : vector<256x8xf32>
    %37 = tpu.matmul %34, %36, %cst_22 {dimension_numbers = #tpu.dot_dimension_numbers<[1], [0], [0], [1], [0, 0, 1, 1], [], []>} : vector<256x4xf32>, vector<4x8xf32>, vector<256x8xf32> -> vector<256x8xf32>
    %38 = arith.addf %32, %37 : vector<256x8xf32>
    %39 = vector.extract_strided_slice %1 {offsets = [2, 0, 0], sizes = [16, 16, 4], strides = [1, 1, 1]} : vector<18x18x4xf32> to vector<16x16x4xf32>
    %40 = vector.shape_cast %39 : vector<16x16x4xf32> to vector<256x4xf32>
    %c6 = arith.constant 6 : index
    %c0_23 = arith.constant 0 : index
    %c0_24 = arith.constant 0 : index
    %41 = vector.load %arg2[%c6, %c0_23, %c0_24] : memref<9x4x8xf32, #tpu.memory_space<vmem>>, vector<1x4x8xf32>
    %42 = vector.shape_cast %41 : vector<1x4x8xf32> to vector<4x8xf32>
    %cst_25 = arith.constant dense<0.000000e+00> : vector<256x8xf32>
    %43 = tpu.matmul %40, %42, %cst_25 {dimension_numbers = #tpu.dot_dimension_numbers<[1], [0], [0], [1], [0, 0, 1, 1], [], []>} : vector<256x4xf32>, vector<4x8xf32>, vector<256x8xf32> -> vector<256x8xf32>
    %44 = arith.addf %38, %43 : vector<256x8xf32>
    %45 = vector.extract_strided_slice %1 {offsets = [2, 1, 0], sizes = [16, 16, 4], strides = [1, 1, 1]} : vector<18x18x4xf32> to vector<16x16x4xf32>
    %46 = vector.shape_cast %45 : vector<16x16x4xf32> to vector<256x4xf32>
    %c7 = arith.constant 7 : index
    %c0_26 = arith.constant 0 : index
    %c0_27 = arith.constant 0 : index
    %47 = vector.load %arg2[%c7, %c0_26, %c0_27] : memref<9x4x8xf32, #tpu.memory_space<vmem>>, vector<1x4x8xf32>
    %48 = vector.shape_cast %47 : vector<1x4x8xf32> to vector<4x8xf32>
    %cst_28 = arith.constant dense<0.000000e+00> : vector<256x8xf32>
    %49 = tpu.matmul %46, %48, %cst_28 {dimension_numbers = #tpu.dot_dimension_numbers<[1], [0], [0], [1], [0, 0, 1, 1], [], []>} : vector<256x4xf32>, vector<4x8xf32>, vector<256x8xf32> -> vector<256x8xf32>
    %50 = arith.addf %44, %49 : vector<256x8xf32>
    %51 = vector.extract_strided_slice %1 {offsets = [2, 2, 0], sizes = [16, 16, 4], strides = [1, 1, 1]} : vector<18x18x4xf32> to vector<16x16x4xf32>
    %52 = vector.shape_cast %51 : vector<16x16x4xf32> to vector<256x4xf32>
    %c8 = arith.constant 8 : index
    %c0_29 = arith.constant 0 : index
    %c0_30 = arith.constant 0 : index
    %53 = vector.load %arg2[%c8, %c0_29, %c0_30] : memref<9x4x8xf32, #tpu.memory_space<vmem>>, vector<1x4x8xf32>
    %54 = vector.shape_cast %53 : vector<1x4x8xf32> to vector<4x8xf32>
    %cst_31 = arith.constant dense<0.000000e+00> : vector<256x8xf32>
    %55 = tpu.matmul %52, %54, %cst_31 {dimension_numbers = #tpu.dot_dimension_numbers<[1], [0], [0], [1], [0, 0, 1, 1], [], []>} : vector<256x4xf32>, vector<4x8xf32>, vector<256x8xf32> -> vector<256x8xf32>
    %56 = arith.addf %50, %55 : vector<256x8xf32>
    %c0_32 = arith.constant 0 : index
    %c0_33 = arith.constant 0 : index
    %57 = vector.load %arg3[%c0_32, %c0_33] : memref<1x8xf32, #tpu.memory_space<vmem>>, vector<1x8xf32>
    %58 = vector.broadcast %57 : vector<1x8xf32> to vector<256x8xf32>
    %59 = arith.mulf %56, %58 : vector<256x8xf32>
    %c0_34 = arith.constant 0 : index
    %c0_35 = arith.constant 0 : index
    %60 = vector.load %arg4[%c0_34, %c0_35] : memref<1x8xf32, #tpu.memory_space<vmem>>, vector<1x8xf32>
    %61 = vector.broadcast %60 : vector<1x8xf32> to vector<256x8xf32>
    %62 = arith.addf %59, %61 : vector<256x8xf32>
    %cst_36 = arith.constant 0.000000e+00 : f32
    %63 = vector.broadcast %cst_36 : f32 to vector<256x8xf32>
    %64 = arith.maximumf %62, %63 : vector<256x8xf32>
    %65 = vector.shape_cast %64 : vector<256x8xf32> to vector<16x16x8xf32>
    %c0_37 = arith.constant 0 : index
    %c0_38 = arith.constant 0 : index
    %c0_39 = arith.constant 0 : index
    %c0_40 = arith.constant 0 : index
    %66 = vector.load %arg5[%c0_37, %c0_38, %c0_39, %c0_40] : memref<1x16x16x8xf32, #tpu.memory_space<vmem>>, vector<1x16x16x8xf32>
    %67 = vector.shape_cast %66 : vector<1x16x16x8xf32> to vector<16x16x8xf32>
    %68 = vector.shape_cast %65 : vector<16x16x8xf32> to vector<1x16x16x8xf32>
    tpu.vector_store %arg5[%c0_37, %c0_38, %c0_39, %c0_40], %68 {strides = array<i32>} : memref<1x16x16x8xf32, #tpu.memory_space<vmem>>, vector<1x16x16x8xf32>,
    return
  }
  func.func @transform_0(%arg0: i32) -> (i32, i32, i32, i32, i32) {
    %c0_i32 = arith.constant 0 : i32
    %c0_i32_0 = arith.constant 0 : i32
    %c0_i32_1 = arith.constant 0 : i32
    %c0_i32_2 = arith.constant 0 : i32
    %c0_i32_3 = arith.constant 0 : i32
    return %arg0, %c0_i32, %c0_i32_0, %c0_i32_1, %c0_i32_2 : i32, i32, i32, i32, i32
  }
  func.func @transform_1(%arg0: i32) -> (i32, i32, i32) {
    %c0_i32 = arith.constant 0 : i32
    %c0_i32_0 = arith.constant 0 : i32
    %c0_i32_1 = arith.constant 0 : i32
    %c0_i32_2 = arith.constant 0 : i32
    return %c0_i32, %c0_i32_0, %c0_i32_1 : i32, i32, i32
  }
  func.func @transform_2(%arg0: i32) -> (i32, i32) {
    %c0_i32 = arith.constant 0 : i32
    %c0_i32_0 = arith.constant 0 : i32
    %c0_i32_1 = arith.constant 0 : i32
    return %c0_i32, %c0_i32_0 : i32, i32
  }
  func.func @transform_3(%arg0: i32) -> (i32, i32) {
    %c0_i32 = arith.constant 0 : i32
    %c0_i32_0 = arith.constant 0 : i32
    %c0_i32_1 = arith.constant 0 : i32
    return %c0_i32, %c0_i32_0 : i32, i32
  }
  func.func @transform_4(%arg0: i32) -> (i32, i32, i32, i32) {
    %c0_i32 = arith.constant 0 : i32
    %c0_i32_0 = arith.constant 0 : i32
    %c0_i32_1 = arith.constant 0 : i32
    %c0_i32_2 = arith.constant 0 : i32
    return %arg0, %c0_i32, %c0_i32_0, %c0_i32_1 : i32, i32, i32, i32
  }
}

</mosaic_0001>

<llo_original>
// kernel: tpu_custom_call.1
$region0: #{tpu_custom_call.1}
  #allocation0 [shape = 'u32[]', space=smem, size = 0x4, offset = 0x4, fixed_abs, tag = 'smem constant byte address 0x4 - core index']
  #allocation1 [shape = 'u32[72,128]{1,0:T(1,128)}', space=vmem, size = 0x9000, scoped, tag = 'internal scratch']
  %s0 = inlined_call_operand.vmem [shape: f32[2,1,18,18,4], index: 0, kind: input, shape index: {}]
  %s1 = inlined_call_operand.vmem [shape: f32[9,4,8], index: 1, kind: input, shape index: {}]
  %s2 = inlined_call_operand.vmem [shape: f32[1,8], index: 2, kind: input, shape index: {}]
  %s3 = inlined_call_operand.vmem [shape: f32[1,8], index: 3, kind: input, shape index: {}]
  %s4 = inlined_call_operand.vmem [shape: f32[2,16,16,8], index: 4, kind: output, shape index: {}]
  %s5 = sld [smem:[#allocation0]]
  $region49: #{tpu_custom_call.1} parent=0
    _
  %s7 = ssub.s32 1, %s5
  %s8 = scalar_select 0, %s7, %s5
  loop: start=0, step=1, limit=4
  $region2: #{tpu_custom_call.1} parent=0 // loop_pre_header
    _
  $region3: #{tpu_custom_call.1} parent=0 // loop_header
    %s10 = sphi 0, %s14
    %p11 = scmp.ge.s32.totalorder %s10, 4
    %s20 = sphi 0, %s22
    %s23 = sphi 0, %s20
    %s24 = sphi 0, %s23
    %s40 = sphi 0, %s24
    %s44 = sphi 0, %s44
    %s46 = sphi 0, %s44
    %s47 = sphi 0, %s46
    %s61 = sphi 0, %s47
    %s65 = sphi 0, %s65
    %s67 = sphi 0, %s65
    %s68 = sphi 0, %s67
    %s82 = sphi 0, %s68
    %s86 = sphi 0, %s86
    %s88 = sphi 0, %s86
    %s89 = sphi 0, %s88
    %s103 = sphi 0, %s89
    %s109 = sphi 0, %s111
    %s112 = sphi 0, %s109
    %s113 = sphi 0, %s112
    %s129 = sphi 0, %s113
  $region4: #{tpu_custom_call.1} parent=0 // loop_header_branch
    %13 = sbr.rel (%p11) target = $region8
  $region5: #{tpu_custom_call.1} parent=0 // loop_body
    %s15 = ssub.s32 %s10, 1
    %s16 = ssub.s32 %s10, 2
    %s17 = sadd.s32 %s10, 1
    %s18 = ssub.s32 %s10, %s17
    %p19 = scmp.eq.s32.totalorder %s18, 0
    %s21 = sadd.s32 %s20, 1
    %s22 = scalar_select %p19, %s20, %s21
    %p25 = pneg %p19
    %p26 = scmp.eq.s32.totalorder %s10, 1
    %p27 = por %p25, %p26
    %p28 = scmp.ne.s32.totalorder %s20, %s23
    %p29 = scmp.eq.s32.totalorder %s10, 0
    %p30 = por %p28, %p29
    %p31 = scmp.ne.s32.totalorder %s20, %s23
    %p32 = scmp.eq.s32.totalorder %s15, 1
    %p33 = por %p31, %p32
    %p34 = scmp.ne.s32.totalorder %s23, %s24
    %p35 = scmp.eq.s32.totalorder %s15, 0
    %p36 = por %p34, %p35
    %p37 = scmp.ne.s32.totalorder %s23, %s24
    %p38 = scmp.eq.s32.totalorder %s16, 1
    %p39 = por %p37, %p38
    %p41 = scmp.ne.s32.totalorder %s24, %s40
    %p42 = scmp.eq.s32.totalorder %s16, 0
    %p43 = por %p41, %p42
    %s45 = sadd.s32 %s44, 1
    %p48 = scmp.eq.s32.totalorder %s10, 1
    %p49 = scmp.ne.s32.totalorder %s44, %s46
    %p50 = scmp.eq.s32.totalorder %s10, 0
    %p51 = por %p49, %p50
    %p52 = scmp.ne.s32.totalorder %s44, %s46
    %p53 = scmp.eq.s32.totalorder %s15, 1
    %p54 = por %p52, %p53
    %p55 = scmp.ne.s32.totalorder %s46, %s47
    %p56 = scmp.eq.s32.totalorder %s15, 0
    %p57 = por %p55, %p56
    %p58 = scmp.ne.s32.totalorder %s46, %s47
    %p59 = scmp.eq.s32.totalorder %s16, 1
    %p60 = por %p58, %p59
    %p62 = scmp.ne.s32.totalorder %s47, %s61
    %p63 = scmp.eq.s32.totalorder %s16, 0
    %p64 = por %p62, %p63
    %s66 = sadd.s32 %s65, 1
    %p69 = scmp.eq.s32.totalorder %s10, 1
    %p70 = scmp.ne.s32.totalorder %s65, %s67
    %p71 = scmp.eq.s32.totalorder %s10, 0
    %p72 = por %p70, %p71
    %p73 = scmp.ne.s32.totalorder %s65, %s67
    %p74 = scmp.eq.s32.totalorder %s15, 1
    %p75 = por %p73, %p74
    %p76 = scmp.ne.s32.totalorder %s67, %s68
    %p77 = scmp.eq.s32.totalorder %s15, 0
    %p78 = por %p76, %p77
    %p79 = scmp.ne.s32.totalorder %s67, %s68
    %p80 = scmp.eq.s32.totalorder %s16, 1
    %p81 = por %p79, %p80
    %p83 = scmp.ne.s32.totalorder %s68, %s82
    %p84 = scmp.eq.s32.totalorder %s16, 0
    %p85 = por %p83, %p84
    %s87 = sadd.s32 %s86, 1
    %p90 = scmp.eq.s32.totalorder %s10, 1
    %p91 = scmp.ne.s32.totalorder %s86, %s88
    %p92 = scmp.eq.s32.totalorder %s10, 0
    %p93 = por %p91, %p92
    %p94 = scmp.ne.s32.totalorder %s86, %s88
    %p95 = scmp.eq.s32.totalorder %s15, 1
    %p96 = por %p94, %p95
    %p97 = scmp.ne.s32.totalorder %s88, %s89
    %p98 = scmp.eq.s32.totalorder %s15, 0
    %p99 = por %p97, %p98
    %p100 = scmp.ne.s32.totalorder %s88, %s89
    %p101 = scmp.eq.s32.totalorder %s16, 1
    %p102 = por %p100, %p101
    %p104 = scmp.ne.s32.totalorder %s89, %s103
    %p105 = scmp.eq.s32.totalorder %s16, 0
    %p106 = por %p104, %p105
    %s107 = ssub.s32 %s10, %s17
    %p108 = scmp.eq.s32.totalorder %s107, 0
    %s110 = sadd.s32 %s109, 1
    %s111 = scalar_select %p108, %s109, %s110
    %p114 = pneg %p108
    %p115 = scmp.eq.s32.totalorder %s10, 1
    %p116 = por %p114, %p115
    %p117 = scmp.ne.s32.totalorder %s109, %s112
    %p118 = scmp.eq.s32.totalorder %s10, 0
    %p119 = por %p117, %p118
    %p120 = scmp.ne.s32.totalorder %s109, %s112
    %p121 = scmp.eq.s32.totalorder %s15, 1
    %p122 = por %p120, %p121
    %p123 = scmp.ne.s32.totalorder %s112, %s113
    %p124 = scmp.eq.s32.totalorder %s15, 0
    %p125 = por %p123, %p124
    %p126 = scmp.ne.s32.totalorder %s112, %s113
    %p127 = scmp.eq.s32.totalorder %s16, 1
    %p128 = por %p126, %p127
    %p130 = scmp.ne.s32.totalorder %s113, %s129
    %p131 = scmp.eq.s32.totalorder %s16, 0
    %p132 = por %p130, %p131
    %p133 = scmp.le.s32.totalorder 1, %s10
    %p134 = scmp.lt.s32.totalorder %s10, 3
    %p135 = pnand %p133, %p134
    %p136 = pneg %p135
    // Predicated region
    $region9: #{tpu_custom_call.1} parent=5 // pred_check
      _
    $region10: #{tpu_custom_call.1} parent=5 // pred_check_branch
      %138 = sbr.rel (%p135) target = $region12
    $region11: #{tpu_custom_call.1} parent=5 // pred_region
      %s139 = ssub.s32 %s10, 1
      // Predicated region
      $region13: #{tpu_custom_call.1} parent=11 // pred_check
        %p140 = pneg %p57
      $region14: #{tpu_custom_call.1} parent=11 // pred_check_branch
        %142 = sbr.rel (%p140) target = $region16
      $region15: #{tpu_custom_call.1} parent=11 // pred_region
        _
      $region16: #{tpu_custom_call.1} parent=11 // pred_fallthru
        _
      // Predicated region
      $region17: #{tpu_custom_call.1} parent=11 // pred_check
        %p143 = pneg %p78
      $region18: #{tpu_custom_call.1} parent=11 // pred_check_branch
        %145 = sbr.rel (%p143) target = $region20
      $region19: #{tpu_custom_call.1} parent=11 // pred_region
        _
      $region20: #{tpu_custom_call.1} parent=11 // pred_fallthru
        _
      // Predicated region
      $region21: #{tpu_custom_call.1} parent=11 // pred_check
        %p146 = pneg %p99
      $region22: #{tpu_custom_call.1} parent=11 // pred_check_branch
        %148 = sbr.rel (%p146) target = $region24
      $region23: #{tpu_custom_call.1} parent=11 // pred_region
        _
      $region24: #{tpu_custom_call.1} parent=11 // pred_fallthru
        _
    $region12: #{tpu_custom_call.1} parent=5 // pred_fallthru
      _
    %p149 = scmp.lt.s32.totalorder %s10, 2
    // Predicated region
    $region25: #{tpu_custom_call.1} parent=5 // pred_check
      %p150 = pneg %p149
    $region26: #{tpu_custom_call.1} parent=5 // pred_check_branch
      %152 = sbr.rel (%p150) target = $region28
    $region27: #{tpu_custom_call.1} parent=5 // pred_region
      // Predicated region
      $region29: #{tpu_custom_call.1} parent=27 // pred_check
        %p153 = pneg %p30
      $region30: #{tpu_custom_call.1} parent=27 // pred_check_branch
        %155 = sbr.rel (%p153) target = $region32
      $region31: #{tpu_custom_call.1} parent=27 // pred_region
        %p156 = scmp.lt.s32.totalorder %s10, 1
        %s157 = scalar_select %p156, %s10, 1
        %s158 = smul.addr %s157, 54
        %s159 = smul.addr %s158, 8
        %s160 = scalar_lea.vmem %s0, %s159
      $region32: #{tpu_custom_call.1} parent=27 // pred_fallthru
        _
    $region28: #{tpu_custom_call.1} parent=5 // pred_fallthru
      _
    %p161 = scmp.le.s32.totalorder 1, %s10
    %p162 = scmp.lt.s32.totalorder %s10, 3
    %p163 = pnand %p161, %p162
    %p164 = pneg %p163
    // Predicated region
    $region33: #{tpu_custom_call.1} parent=5 // pred_check
      _
    $region34: #{tpu_custom_call.1} parent=5 // pred_check_branch
      %166 = sbr.rel (%p163) target = $region36
    $region35: #{tpu_custom_call.1} parent=5 // pred_region
      %s167 = ssub.s32 %s10, 1
      %p168 = scmp.lt.s32.totalorder %s15, 1
      %s169 = scalar_select %p168, %s15, 1
      %s170 = smul.addr %s169, 54
      %s171 = smul.addr %s170, 8
      %s172 = scalar_lea.vmem %s0, %s171
      %p173 = pneg %p36
      %p174 = pneg %p33
      %p175 = pneg %p57
      %p176 = pneg %p54
      %p177 = pneg %p78
      %p178 = pneg %p75
      %p179 = pneg %p99
      %p180 = pneg %p96
      %p181 = pneg %p125
      %p182 = pneg %p122
      %p183 = scmp.lt.s32.totalorder %s15, 1
      %s184 = scalar_select %p183, %s15, 1
      %s185 = smul.addr %s184, 32
      %s186 = smul.addr %s185, 8
      %s187 = scalar_lea.vmem %s4, %s186
      %p188 = scmp.lt.s32.totalorder %s15, 1
      %s189 = scalar_select %p188, %s15, 1
      %s190 = smul.addr %s189, 54
      %s191 = smul.addr %s190, 8
      %s192 = scalar_lea.vmem %s0, %s191
      %p193 = scmp.lt.s32.totalorder %s15, 1
      %s194 = scalar_select %p193, %s15, 1
      %s195 = smul.addr %s194, 32
      %s196 = smul.addr %s195, 8
      %s197 = scalar_lea.vmem %s4, %s196
      %v198 = vld [vmem:[%s192] sm:$0xff]
      %v199 = vld [vmem:[%s192 + $0x8] sm:$0xff]
      %v200 = vld [vmem:[%s192 + $0x10] sm:$0x3]
      %v201 = vld [vmem:[%s192 + $0x18] sm:$0xff]
      %v202 = vld [vmem:[%s192 + $0x20] sm:$0xff]
      %v203 = vld [vmem:[%s192 + $0x28] sm:$0x3]
      %v204 = vld [vmem:[%s192 + $0x30] sm:$0xff]
      %v205 = vld [vmem:[%s192 + $0x38] sm:$0xff]
      %v206 = vld [vmem:[%s192 + $0x40] sm:$0x3]
      %v207 = vld [vmem:[%s192 + $0x48] sm:$0xff]
      %v208 = vld [vmem:[%s192 + $0x50] sm:$0xff]
      %v209 = vld [vmem:[%s192 + $0x58] sm:$0x3]
      %v210 = vld [vmem:[%s192 + $0x60] sm:$0xff]
      %v211 = vld [vmem:[%s192 + $0x68] sm:$0xff]
      %v212 = vld [vmem:[%s192 + $0x70] sm:$0x3]
      %v213 = vld [vmem:[%s192 + $0x78] sm:$0xff]
      %v214 = vld [vmem:[%s192 + $0x80] sm:$0xff]
      %v215 = vld [vmem:[%s192 + $0x88] sm:$0x3]
      %v216 = vld [vmem:[%s192 + $0x90] sm:$0xff]
      %v217 = vld [vmem:[%s192 + $0x98] sm:$0xff]
      %v218 = vld [vmem:[%s192 + $0xa0] sm:$0x3]
      %v219 = vld [vmem:[%s192 + $0xa8] sm:$0xff]
      %v220 = vld [vmem:[%s192 + $0xb0] sm:$0xff]
      %v221 = vld [vmem:[%s192 + $0xb8] sm:$0x3]
      %v222 = vld [vmem:[%s192 + $0xc0] sm:$0xff]
      %v223 = vld [vmem:[%s192 + $0xc8] sm:$0xff]
      %v224 = vld [vmem:[%s192 + $0xd0] sm:$0x3]
      %v225 = vld [vmem:[%s192 + $0xd8] sm:$0xff]
      %v226 = vld [vmem:[%s192 + $0xe0] sm:$0xff]
      %v227 = vld [vmem:[%s192 + $0xe8] sm:$0x3]
      %v228 = vld [vmem:[%s192 + $0xf0] sm:$0xff]
      %v229 = vld [vmem:[%s192 + $0xf8] sm:$0xff]
      %v230 = vld [vmem:[%s192 + $0x100] sm:$0x3]
      %v231 = vld [vmem:[%s192 + $0x108] sm:$0xff]
      %v232 = vld [vmem:[%s192 + $0x110] sm:$0xff]
      %v233 = vld [vmem:[%s192 + $0x118] sm:$0x3]
      %v234 = vld [vmem:[%s192 + $0x120] sm:$0xff]
      %v235 = vld [vmem:[%s192 + $0x128] sm:$0xff]
      %v236 = vld [vmem:[%s192 + $0x130] sm:$0x3]
      %v237 = vld [vmem:[%s192 + $0x138] sm:$0xff]
      %v238 = vld [vmem:[%s192 + $0x140] sm:$0xff]
      %v239 = vld [vmem:[%s192 + $0x148] sm:$0x3]
      %v240 = vld [vmem:[%s192 + $0x150] sm:$0xff]
      %v241 = vld [vmem:[%s192 + $0x158] sm:$0xff]
      %v242 = vld [vmem:[%s192 + $0x160] sm:$0x3]
      %v243 = vld [vmem:[%s192 + $0x168] sm:$0xff]
      %v244 = vld [vmem:[%s192 + $0x170] sm:$0xff]
      %v245 = vld [vmem:[%s192 + $0x178] sm:$0x3]
      %v246 = vld [vmem:[%s192 + $0x180] sm:$0xff]
      %v247 = vld [vmem:[%s192 + $0x188] sm:$0xff]
      %v248 = vld [vmem:[%s192 + $0x190] sm:$0x3]
      %v249 = vld [vmem:[%s192 + $0x198] sm:$0xff]
      %v250 = vld [vmem:[%s192 + $0x1a0] sm:$0xff]
      %v251 = vld [vmem:[%s192 + $0x1a8] sm:$0x3]
      %v252 = vld [vmem:[%s1] sm:$0xf]
      %vm301 = vcmask 1046528
      %v302 = vrot.slane %v198, 1
      %v303 = vrot.slane %v199, 1
      %v304 = vsel %vm301, %v302, %v303
      %v305 = vrot.slane %v200, 1
      %v306 = vsel %vm301, %v303, %v305
      %v307 = vrot.slane %v201, 1
      %v308 = vrot.slane %v202, 1
      %v309 = vsel %vm301, %v307, %v308
      %v310 = vrot.slane %v203, 1
      %v311 = vsel %vm301, %v308, %v310
      %v312 = vrot.slane %v204, 1
      %v313 = vrot.slane %v205, 1
      %v314 = vsel %vm301, %v312, %v313
      %v315 = vrot.slane %v206, 1
      %v316 = vsel %vm301, %v313, %v315
      %v317 = vrot.slane %v207, 1
      %v318 = vrot.slane %v208, 1
      %v319 = vsel %vm301, %v317, %v318
      %v320 = vrot.slane %v209, 1
      %v321 = vsel %vm301, %v318, %v320
      %v322 = vrot.slane %v210, 1
      %v323 = vrot.slane %v211, 1
      %v324 = vsel %vm301, %v322, %v323
      %v325 = vrot.slane %v212, 1
      %v326 = vsel %vm301, %v323, %v325
      %v327 = vrot.slane %v213, 1
      %v328 = vrot.slane %v214, 1
      %v329 = vsel %vm301, %v327, %v328
      %v330 = vrot.slane %v215, 1
      %v331 = vsel %vm301, %v328, %v330
      %v332 = vrot.slane %v216, 1
      %v333 = vrot.slane %v217, 1
      %v334 = vsel %vm301, %v332, %v333
      %v335 = vrot.slane %v218, 1
      %v336 = vsel %vm301, %v333, %v335
      %v337 = vrot.slane %v219, 1
      %v338 = vrot.slane %v220, 1
      %v339 = vsel %vm301, %v337, %v338
      %v340 = vrot.slane %v221, 1
      %v341 = vsel %vm301, %v338, %v340
      %v342 = vrot.slane %v222, 1
      %v343 = vrot.slane %v223, 1
      %v344 = vsel %vm301, %v342, %v343
      %v345 = vrot.slane %v224, 1
      %v346 = vsel %vm301, %v343, %v345
      %v347 = vrot.slane %v225, 1
      %v348 = vrot.slane %v226, 1
      %v349 = vsel %vm301, %v347, %v348
      %v350 = vrot.slane %v227, 1
      %v351 = vsel %vm301, %v348, %v350
      %v352 = vrot.slane %v228, 1
      %v353 = vrot.slane %v229, 1
      %v354 = vsel %vm301, %v352, %v353
      %v355 = vrot.slane %v230, 1
      %v356 = vsel %vm301, %v353, %v355
      %v357 = vrot.slane %v231, 1
      %v358 = vrot.slane %v232, 1
      %v359 = vsel %vm301, %v357, %v358
      %v360 = vrot.slane %v233, 1
      %v361 = vsel %vm301, %v358, %v360
      %v362 = vrot.slane %v234, 1
      %v363 = vrot.slane %v235, 1
      %v364 = vsel %vm301, %v362, %v363
      %v365 = vrot.slane %v236, 1
      %v366 = vsel %vm301, %v363, %v365
      %v367 = vrot.slane %v237, 1
      %v368 = vrot.slane %v238, 1
      %v369 = vsel %vm301, %v367, %v368
      %v370 = vrot.slane %v239, 1
      %v371 = vsel %vm301, %v368, %v370
      %v372 = vrot.slane %v240, 1
      %v373 = vrot.slane %v241, 1
      %v374 = vsel %vm301, %v372, %v373
      %v375 = vrot.slane %v242, 1
      %v376 = vsel %vm301, %v373, %v375
      %v377 = vrot.slane %v243, 1
      %v378 = vrot.slane %v244, 1
      %v379 = vsel %vm301, %v377, %v378
      %v380 = vrot.slane %v245, 1
      %v381 = vsel %vm301, %v378, %v380
      %s382 = scalar_lea.vmem %s1, 4
      %v383 = vld [vmem:[%s382] sm:$0xf]
      %vm384 = vcmask 31744
      %v385 = vsel %vm384, %v304, 0
      %v387 = vsel %vm384, %v306, 0
      %v389 = vsel %vm384, %v309, 0
      %v391 = vsel %vm384, %v311, 0
      %v393 = vsel %vm384, %v314, 0
      %v395 = vsel %vm384, %v316, 0
      %v397 = vsel %vm384, %v319, 0
      %v399 = vsel %vm384, %v321, 0
      %v401 = vsel %vm384, %v324, 0
      %v403 = vsel %vm384, %v326, 0
      %v405 = vsel %vm384, %v329, 0
      %v407 = vsel %vm384, %v331, 0
      %v409 = vsel %vm384, %v334, 0
      %v411 = vsel %vm384, %v336, 0
      %v413 = vsel %vm384, %v339, 0
      %v415 = vsel %vm384, %v341, 0
      %v417 = vsel %vm384, %v344, 0
      %v419 = vsel %vm384, %v346, 0
      %v421 = vsel %vm384, %v349, 0
      %v423 = vsel %vm384, %v351, 0
      %v425 = vsel %vm384, %v354, 0
      %v427 = vsel %vm384, %v356, 0
      %v429 = vsel %vm384, %v359, 0
      %v431 = vsel %vm384, %v361, 0
      %v433 = vsel %vm384, %v364, 0
      %v435 = vsel %vm384, %v366, 0
      %v437 = vsel %vm384, %v369, 0
      %v439 = vsel %vm384, %v371, 0
      %v441 = vsel %vm384, %v374, 0
      %v443 = vsel %vm384, %v376, 0
      %v445 = vsel %vm384, %v379, 0
      %v447 = vsel %vm384, %v381, 0
      %vm449 = vcmask 1043456
      %v451 = vsel %vm449, %v383, 0
      %453 = vmatpush.msra.mxu0 0.0
      %454 = vmatpush.msra.mxu0 0.0
      %455 = vmatpush.msra.mxu0 0.0
      %456 = vmatpush.msra.mxu0 0.0
      %457 = vmatpush.msra.mxu0 0.0
      %458 = vmatpush.msra.mxu0 0.0
      %459 = vmatpush.msra.mxu0 0.0
      %460 = vmatpush.msra.mxu0 0.0
      %461 = vmatpush.msra.mxu0 0.0
      %462 = vmatpush.msra.mxu0 0.0
      %463 = vmatpush.msra.mxu0 0.0
      %464 = vmatpush.msra.mxu0 0.0
      %465 = vmatpush.msra.mxu0 0.0
      %466 = vmatpush.msra.mxu0 0.0
      %467 = vmatpush.msra.mxu0 0.0
      %468 = vmatpush.msra.mxu0 %v451
      %469 = vmatmul.f32.gmra.mxu0 %v385
      %v470 = vpop.f32.mrf.mxu0
      %v471 = vadd.f32 0.0, %v470
      %472 = vmatmul.f32.gmra.mxu0 %v387
      %v473 = vpop.f32.mrf.mxu0
      %v474 = vadd.f32 0.0, %v473
      %475 = vmatmul.f32.gmra.mxu0 %v389
      %v476 = vpop.f32.mrf.mxu0
      %v477 = vadd.f32 0.0, %v476
      %478 = vmatmul.f32.gmra.mxu0 %v391
      %v479 = vpop.f32.mrf.mxu0
      %v480 = vadd.f32 0.0, %v479
      %481 = vmatmul.f32.gmra.mxu0 %v393
      %v482 = vpop.f32.mrf.mxu0
      %v483 = vadd.f32 0.0, %v482
      %484 = vmatmul.f32.gmra.mxu0 %v395
      %v485 = vpop.f32.mrf.mxu0
      %v486 = vadd.f32 0.0, %v485
      %487 = vmatmul.f32.gmra.mxu0 %v397
      %v488 = vpop.f32.mrf.mxu0
      %v489 = vadd.f32 0.0, %v488
      %490 = vmatmul.f32.gmra.mxu0 %v399
      %v491 = vpop.f32.mrf.mxu0
      %v492 = vadd.f32 0.0, %v491
      %493 = vmatmul.f32.gmra.mxu0 %v401
      %v494 = vpop.f32.mrf.mxu0
      %v495 = vadd.f32 0.0, %v494
      %496 = vmatmul.f32.gmra.mxu0 %v403
      %v497 = vpop.f32.mrf.mxu0
      %v498 = vadd.f32 0.0, %v497
      %499 = vmatmul.f32.gmra.mxu0 %v405
      %v500 = vpop.f32.mrf.mxu0
      %v501 = vadd.f32 0.0, %v500
      %502 = vmatmul.f32.gmra.mxu0 %v407
      %v503 = vpop.f32.mrf.mxu0
      %v504 = vadd.f32 0.0, %v503
      %505 = vmatmul.f32.gmra.mxu0 %v409
      %v506 = vpop.f32.mrf.mxu0
      %v507 = vadd.f32 0.0, %v506
      %508 = vmatmul.f32.gmra.mxu0 %v411
      %v509 = vpop.f32.mrf.mxu0
      %v510 = vadd.f32 0.0, %v509
      %511 = vmatmul.f32.gmra.mxu0 %v413
      %v512 = vpop.f32.mrf.mxu0
      %v513 = vadd.f32 0.0, %v512
      %514 = vmatmul.f32.gmra.mxu0 %v415
      %v515 = vpop.f32.mrf.mxu0
      %v516 = vadd.f32 0.0, %v515
      %517 = vmatmul.f32.gmra.mxu0 %v417
      %v518 = vpop.f32.mrf.mxu0
      %v519 = vadd.f32 0.0, %v518
      %520 = vmatmul.f32.gmra.mxu0 %v419
      %v521 = vpop.f32.mrf.mxu0
      %v522 = vadd.f32 0.0, %v521
      %523 = vmatmul.f32.gmra.mxu0 %v421
      %v524 = vpop.f32.mrf.mxu0
      %v525 = vadd.f32 0.0, %v524
      %526 = vmatmul.f32.gmra.mxu0 %v423
      %v527 = vpop.f32.mrf.mxu0
      %v528 = vadd.f32 0.0, %v527
      %529 = vmatmul.f32.gmra.mxu0 %v425
      %v530 = vpop.f32.mrf.mxu0
      %v531 = vadd.f32 0.0, %v530
      %532 = vmatmul.f32.gmra.mxu0 %v427
      %v533 = vpop.f32.mrf.mxu0
      %v534 = vadd.f32 0.0, %v533
      %535 = vmatmul.f32.gmra.mxu0 %v429
      %v536 = vpop.f32.mrf.mxu0
      %v537 = vadd.f32 0.0, %v536
      %538 = vmatmul.f32.gmra.mxu0 %v431
      %v539 = vpop.f32.mrf.mxu0
      %v540 = vadd.f32 0.0, %v539
      %541 = vmatmul.f32.gmra.mxu0 %v433
      %v542 = vpop.f32.mrf.mxu0
      %v543 = vadd.f32 0.0, %v542
      %544 = vmatmul.f32.gmra.mxu0 %v435
      %v545 = vpop.f32.mrf.mxu0
      %v546 = vadd.f32 0.0, %v545
      %547 = vmatmul.f32.gmra.mxu0 %v437
      %v548 = vpop.f32.mrf.mxu0
      %v549 = vadd.f32 0.0, %v548
      %550 = vmatmul.f32.gmra.mxu0 %v439
      %v551 = vpop.f32.mrf.mxu0
      %v552 = vadd.f32 0.0, %v551
      %553 = vmatmul.f32.gmra.mxu0 %v441
      %v554 = vpop.f32.mrf.mxu0
      %v555 = vadd.f32 0.0, %v554
      %556 = vmatmul.f32.gmra.mxu0 %v443
      %v557 = vpop.f32.mrf.mxu0
      %v558 = vadd.f32 0.0, %v557
      %559 = vmatmul.f32.gmra.mxu0 %v445
      %v560 = vpop.f32.mrf.mxu0
      %v561 = vadd.f32 0.0, %v560
      %562 = vmatmul.f32.gmra.mxu0 %v447
      %v563 = vpop.f32.mrf.mxu0
      %v564 = vadd.f32 0.0, %v563
      %565 = vdwg.mxu0
      %v566 = vsel %vm384, %v198, 0
      %v568 = vsel %vm384, %v199, 0
      %v570 = vsel %vm384, %v201, 0
      %v572 = vsel %vm384, %v202, 0
      %v574 = vsel %vm384, %v204, 0
      %v576 = vsel %vm384, %v205, 0
      %v578 = vsel %vm384, %v207, 0
      %v580 = vsel %vm384, %v208, 0
      %v582 = vsel %vm384, %v210, 0
      %v584 = vsel %vm384, %v211, 0
      %v586 = vsel %vm384, %v213, 0
      %v588 = vsel %vm384, %v214, 0
      %v590 = vsel %vm384, %v216, 0
      %v592 = vsel %vm384, %v217, 0
      %v594 = vsel %vm384, %v219, 0
      %v596 = vsel %vm384, %v220, 0
      %v598 = vsel %vm384, %v222, 0
      %v600 = vsel %vm384, %v223, 0
      %v602 = vsel %vm384, %v225, 0
      %v604 = vsel %vm384, %v226, 0
      %v606 = vsel %vm384, %v228, 0
      %v608 = vsel %vm384, %v229, 0
      %v610 = vsel %vm384, %v231, 0
      %v612 = vsel %vm384, %v232, 0
      %v614 = vsel %vm384, %v234, 0
      %v616 = vsel %vm384, %v235, 0
      %v618 = vsel %vm384, %v237, 0
      %v620 = vsel %vm384, %v238, 0
      %v622 = vsel %vm384, %v240, 0
      %v624 = vsel %vm384, %v241, 0
      %v626 = vsel %vm384, %v243, 0
      %v628 = vsel %vm384, %v244, 0
      %v631 = vsel %vm449, %v252, 0
      %633 = vmatpush.msra.mxu0 0.0
      %634 = vmatpush.msra.mxu0 0.0
      %635 = vmatpush.msra.mxu0 0.0
      %636 = vmatpush.msra.mxu0 0.0
      %637 = vmatpush.msra.mxu0 0.0
      %638 = vmatpush.msra.mxu0 0.0
      %639 = vmatpush.msra.mxu0 0.0
      %640 = vmatpush.msra.mxu0 0.0
      %641 = vmatpush.msra.mxu0 0.0
      %642 = vmatpush.msra.mxu0 0.0
      %643 = vmatpush.msra.mxu0 0.0
      %644 = vmatpush.msra.mxu0 0.0
      %645 = vmatpush.msra.mxu0 0.0
      %646 = vmatpush.msra.mxu0 0.0
      %647 = vmatpush.msra.mxu0 0.0
      %648 = vmatpush.msra.mxu0 %v631
      %649 = vmatmul.f32.gmra.mxu0 %v566
      %v650 = vpop.f32.mrf.mxu0
      %v651 = vadd.f32 %v471, %v650
      %652 = vmatmul.f32.gmra.mxu0 %v568
      %v653 = vpop.f32.mrf.mxu0
      %v654 = vadd.f32 %v474, %v653
      %655 = vmatmul.f32.gmra.mxu0 %v570
      %v656 = vpop.f32.mrf.mxu0
      %v657 = vadd.f32 %v477, %v656
      %658 = vmatmul.f32.gmra.mxu0 %v572
      %v659 = vpop.f32.mrf.mxu0
      %v660 = vadd.f32 %v480, %v659
      %661 = vmatmul.f32.gmra.mxu0 %v574
      %v662 = vpop.f32.mrf.mxu0
      %v663 = vadd.f32 %v483, %v662
      %664 = vmatmul.f32.gmra.mxu0 %v576
      %v665 = vpop.f32.mrf.mxu0
      %v666 = vadd.f32 %v486, %v665
      %667 = vmatmul.f32.gmra.mxu0 %v578
      %v668 = vpop.f32.mrf.mxu0
      %v669 = vadd.f32 %v489, %v668
      %670 = vmatmul.f32.gmra.mxu0 %v580
      %v671 = vpop.f32.mrf.mxu0
      %v672 = vadd.f32 %v492, %v671
      %673 = vmatmul.f32.gmra.mxu0 %v582
      %v674 = vpop.f32.mrf.mxu0
      %v675 = vadd.f32 %v495, %v674
      %676 = vmatmul.f32.gmra.mxu0 %v584
      %v677 = vpop.f32.mrf.mxu0
      %v678 = vadd.f32 %v498, %v677
      %679 = vmatmul.f32.gmra.mxu0 %v586
      %v680 = vpop.f32.mrf.mxu0
      %v681 = vadd.f32 %v501, %v680
      %682 = vmatmul.f32.gmra.mxu0 %v588
      %v683 = vpop.f32.mrf.mxu0
      %v684 = vadd.f32 %v504, %v683
      %685 = vmatmul.f32.gmra.mxu0 %v590
      %v686 = vpop.f32.mrf.mxu0
      %v687 = vadd.f32 %v507, %v686
      %688 = vmatmul.f32.gmra.mxu0 %v592
      %v689 = vpop.f32.mrf.mxu0
      %v690 = vadd.f32 %v510, %v689
      %691 = vmatmul.f32.gmra.mxu0 %v594
      %v692 = vpop.f32.mrf.mxu0
      %v693 = vadd.f32 %v513, %v692
      %694 = vmatmul.f32.gmra.mxu0 %v596
      %v695 = vpop.f32.mrf.mxu0
      %v696 = vadd.f32 %v516, %v695
      %697 = vmatmul.f32.gmra.mxu0 %v598
      %v698 = vpop.f32.mrf.mxu0
      %v699 = vadd.f32 %v519, %v698
      %700 = vmatmul.f32.gmra.mxu0 %v600
      %v701 = vpop.f32.mrf.mxu0
      %v702 = vadd.f32 %v522, %v701
      %703 = vmatmul.f32.gmra.mxu0 %v602
      %v704 = vpop.f32.mrf.mxu0
      %v705 = vadd.f32 %v525, %v704
      %706 = vmatmul.f32.gmra.mxu0 %v604
      %v707 = vpop.f32.mrf.mxu0
      %v708 = vadd.f32 %v528, %v707
      %709 = vmatmul.f32.gmra.mxu0 %v606
      %v710 = vpop.f32.mrf.mxu0
      %v711 = vadd.f32 %v531, %v710
      %712 = vmatmul.f32.gmra.mxu0 %v608
      %v713 = vpop.f32.mrf.mxu0
      %v714 = vadd.f32 %v534, %v713
      %715 = vmatmul.f32.gmra.mxu0 %v610
      %v716 = vpop.f32.mrf.mxu0
      %v717 = vadd.f32 %v537, %v716
      %718 = vmatmul.f32.gmra.mxu0 %v612
      %v719 = vpop.f32.mrf.mxu0
      %v720 = vadd.f32 %v540, %v719
      %721 = vmatmul.f32.gmra.mxu0 %v614
      %v722 = vpop.f32.mrf.mxu0
      %v723 = vadd.f32 %v543, %v722
      %724 = vmatmul.f32.gmra.mxu0 %v616
      %v725 = vpop.f32.mrf.mxu0
      %v726 = vadd.f32 %v546, %v725
      %727 = vmatmul.f32.gmra.mxu0 %v618
      %v728 = vpop.f32.mrf.mxu0
      %v729 = vadd.f32 %v549, %v728
      %730 = vmatmul.f32.gmra.mxu0 %v620
      %v731 = vpop.f32.mrf.mxu0
      %v732 = vadd.f32 %v552, %v731
      %733 = vmatmul.f32.gmra.mxu0 %v622
      %v734 = vpop.f32.mrf.mxu0
      %v735 = vadd.f32 %v555, %v734
      %736 = vmatmul.f32.gmra.mxu0 %v624
      %v737 = vpop.f32.mrf.mxu0
      %v738 = vadd.f32 %v558, %v737
      %739 = vmatmul.f32.gmra.mxu0 %v626
      %v740 = vpop.f32.mrf.mxu0
      %v741 = vadd.f32 %v561, %v740
      %742 = vmatmul.f32.gmra.mxu0 %v628
      %v743 = vpop.f32.mrf.mxu0
      %v744 = vadd.f32 %v564, %v743
      %745 = vdwg.mxu0
      %vm746 = vcmask 1045504
      %v747 = vrot.slane %v198, 2
      %v748 = vrot.slane %v199, 2
      %v749 = vsel %vm746, %v747, %v748
      %v750 = vrot.slane %v200, 2
      %v751 = vsel %vm746, %v748, %v750
      %v752 = vrot.slane %v201, 2
      %v753 = vrot.slane %v202, 2
      %v754 = vsel %vm746, %v752, %v753
      %v755 = vrot.slane %v203, 2
      %v756 = vsel %vm746, %v753, %v755
      %v757 = vrot.slane %v204, 2
      %v758 = vrot.slane %v205, 2
      %v759 = vsel %vm746, %v757, %v758
      %v760 = vrot.slane %v206, 2
      %v761 = vsel %vm746, %v758, %v760
      %v762 = vrot.slane %v207, 2
      %v763 = vrot.slane %v208, 2
      %v764 = vsel %vm746, %v762, %v763
      %v765 = vrot.slane %v209, 2
      %v766 = vsel %vm746, %v763, %v765
      %v767 = vrot.slane %v210, 2
      %v768 = vrot.slane %v211, 2
      %v769 = vsel %vm746, %v767, %v768
      %v770 = vrot.slane %v212, 2
      %v771 = vsel %vm746, %v768, %v770
      %v772 = vrot.slane %v213, 2
      %v773 = vrot.slane %v214, 2
      %v774 = vsel %vm746, %v772, %v773
      %v775 = vrot.slane %v215, 2
      %v776 = vsel %vm746, %v773, %v775
      %v777 = vrot.slane %v216, 2
      %v778 = vrot.slane %v217, 2
      %v779 = vsel %vm746, %v777, %v778
      %v780 = vrot.slane %v218, 2
      %v781 = vsel %vm746, %v778, %v780
      %v782 = vrot.slane %v219, 2
      %v783 = vrot.slane %v220, 2
      %v784 = vsel %vm746, %v782, %v783
      %v785 = vrot.slane %v221, 2
      %v786 = vsel %vm746, %v783, %v785
      %v787 = vrot.slane %v222, 2
      %v788 = vrot.slane %v223, 2
      %v789 = vsel %vm746, %v787, %v788
      %v790 = vrot.slane %v224, 2
      %v791 = vsel %vm746, %v788, %v790
      %v792 = vrot.slane %v225, 2
      %v793 = vrot.slane %v226, 2
      %v794 = vsel %vm746, %v792, %v793
      %v795 = vrot.slane %v227, 2
      %v796 = vsel %vm746, %v793, %v795
      %v797 = vrot.slane %v228, 2
      %v798 = vrot.slane %v229, 2
      %v799 = vsel %vm746, %v797, %v798
      %v800 = vrot.slane %v230, 2
      %v801 = vsel %vm746, %v798, %v800
      %v802 = vrot.slane %v231, 2
      %v803 = vrot.slane %v232, 2
      %v804 = vsel %vm746, %v802, %v803
      %v805 = vrot.slane %v233, 2
      %v806 = vsel %vm746, %v803, %v805
      %v807 = vrot.slane %v234, 2
      %v808 = vrot.slane %v235, 2
      %v809 = vsel %vm746, %v807, %v808
      %v810 = vrot.slane %v236, 2
      %v811 = vsel %vm746, %v808, %v810
      %v812 = vrot.slane %v237, 2
      %v813 = vrot.slane %v238, 2
      %v814 = vsel %vm746, %v812, %v813
      %v815 = vrot.slane %v239, 2
      %v816 = vsel %vm746, %v813, %v815
      %v817 = vrot.slane %v240, 2
      %v818 = vrot.slane %v241, 2
      %v819 = vsel %vm746, %v817, %v818
      %v820 = vrot.slane %v242, 2
      %v821 = vsel %vm746, %v818, %v820
      %v822 = vrot.slane %v243, 2
      %v823 = vrot.slane %v244, 2
      %v824 = vsel %vm746, %v822, %v823
      %v825 = vrot.slane %v245, 2
      %v826 = vsel %vm746, %v823, %v825
      %s827 = scalar_lea.vmem %s1, 8
      %v828 = vld [vmem:[%s827] sm:$0xf]
      %v829 = vsel %vm384, %v749, 0
      %v831 = vsel %vm384, %v751, 0
      %v833 = vsel %vm384, %v754, 0
      %v835 = vsel %vm384, %v756, 0
      %v837 = vsel %vm384, %v759, 0
      %v839 = vsel %vm384, %v761, 0
      %v841 = vsel %vm384, %v764, 0
      %v843 = vsel %vm384, %v766, 0
      %v845 = vsel %vm384, %v769, 0
      %v847 = vsel %vm384, %v771, 0
      %v849 = vsel %vm384, %v774, 0
      %v851 = vsel %vm384, %v776, 0
      %v853 = vsel %vm384, %v779, 0
      %v855 = vsel %vm384, %v781, 0
      %v857 = vsel %vm384, %v784, 0
      %v859 = vsel %vm384, %v786, 0
      %v861 = vsel %vm384, %v789, 0
      %v863 = vsel %vm384, %v791, 0
      %v865 = vsel %vm384, %v794, 0
      %v867 = vsel %vm384, %v796, 0
      %v869 = vsel %vm384, %v799, 0
      %v871 = vsel %vm384, %v801, 0
      %v873 = vsel %vm384, %v804, 0
      %v875 = vsel %vm384, %v806, 0
      %v877 = vsel %vm384, %v809, 0
      %v879 = vsel %vm384, %v811, 0
      %v881 = vsel %vm384, %v814, 0
      %v883 = vsel %vm384, %v816, 0
      %v885 = vsel %vm384, %v819, 0
      %v887 = vsel %vm384, %v821, 0
      %v889 = vsel %vm384, %v824, 0
      %v891 = vsel %vm384, %v826, 0
      %v894 = vsel %vm449, %v828, 0
      %896 = vmatpush.msra.mxu0 0.0
      %897 = vmatpush.msra.mxu0 0.0
      %898 = vmatpush.msra.mxu0 0.0
      %899 = vmatpush.msra.mxu0 0.0
      %900 = vmatpush.msra.mxu0 0.0
      %901 = vmatpush.msra.mxu0 0.0
      %902 = vmatpush.msra.mxu0 0.0
      %903 = vmatpush.msra.mxu0 0.0
      %904 = vmatpush.msra.mxu0 0.0
      %905 = vmatpush.msra.mxu0 0.0
      %906 = vmatpush.msra.mxu0 0.0
      %907 = vmatpush.msra.mxu0 0.0
      %908 = vmatpush.msra.mxu0 0.0
      %909 = vmatpush.msra.mxu0 0.0
      %910 = vmatpush.msra.mxu0 0.0
      %911 = vmatpush.msra.mxu0 %v894
      %912 = vmatmul.f32.gmra.mxu0 %v829
      %v913 = vpop.f32.mrf.mxu0
      %v914 = vadd.f32 0.0, %v913
      %915 = vmatmul.f32.gmra.mxu0 %v831
      %v916 = vpop.f32.mrf.mxu0
      %v917 = vadd.f32 0.0, %v916
      %918 = vmatmul.f32.gmra.mxu0 %v833
      %v919 = vpop.f32.mrf.mxu0
      %v920 = vadd.f32 0.0, %v919
      %921 = vmatmul.f32.gmra.mxu0 %v835
      %v922 = vpop.f32.mrf.mxu0
      %v923 = vadd.f32 0.0, %v922
      %924 = vmatmul.f32.gmra.mxu0 %v837
      %v925 = vpop.f32.mrf.mxu0
      %v926 = vadd.f32 0.0, %v925
      %927 = vmatmul.f32.gmra.mxu0 %v839
      %v928 = vpop.f32.mrf.mxu0
      %v929 = vadd.f32 0.0, %v928
      %930 = vmatmul.f32.gmra.mxu0 %v841
      %v931 = vpop.f32.mrf.mxu0
      %v932 = vadd.f32 0.0, %v931
      %933 = vmatmul.f32.gmra.mxu0 %v843
      %v934 = vpop.f32.mrf.mxu0
      %v935 = vadd.f32 0.0, %v934
      %936 = vmatmul.f32.gmra.mxu0 %v845
      %v937 = vpop.f32.mrf.mxu0
      %v938 = vadd.f32 0.0, %v937
      %939 = vmatmul.f32.gmra.mxu0 %v847
      %v940 = vpop.f32.mrf.mxu0
      %v941 = vadd.f32 0.0, %v940
      %942 = vmatmul.f32.gmra.mxu0 %v849
      %v943 = vpop.f32.mrf.mxu0
      %v944 = vadd.f32 0.0, %v943
      %945 = vmatmul.f32.gmra.mxu0 %v851
      %v946 = vpop.f32.mrf.mxu0
      %v947 = vadd.f32 0.0, %v946
      %948 = vmatmul.f32.gmra.mxu0 %v853
      %v949 = vpop.f32.mrf.mxu0
      %v950 = vadd.f32 0.0, %v949
      %951 = vmatmul.f32.gmra.mxu0 %v855
      %v952 = vpop.f32.mrf.mxu0
      %v953 = vadd.f32 0.0, %v952
      %954 = vmatmul.f32.gmra.mxu0 %v857
      %v955 = vpop.f32.mrf.mxu0
      %v956 = vadd.f32 0.0, %v955
      %957 = vmatmul.f32.gmra.mxu0 %v859
      %v958 = vpop.f32.mrf.mxu0
      %v959 = vadd.f32 0.0, %v958
      %960 = vmatmul.f32.gmra.mxu0 %v861
      %v961 = vpop.f32.mrf.mxu0
      %v962 = vadd.f32 0.0, %v961
      %963 = vmatmul.f32.gmra.mxu0 %v863
      %v964 = vpop.f32.mrf.mxu0
      %v965 = vadd.f32 0.0, %v964
      %966 = vmatmul.f32.gmra.mxu0 %v865
      %v967 = vpop.f32.mrf.mxu0
      %v968 = vadd.f32 0.0, %v967
      %969 = vmatmul.f32.gmra.mxu0 %v867
      %v970 = vpop.f32.mrf.mxu0
      %v971 = vadd.f32 0.0, %v970
      %972 = vmatmul.f32.gmra.mxu0 %v869
      %v973 = vpop.f32.mrf.mxu0
      %v974 = vadd.f32 0.0, %v973
      %975 = vmatmul.f32.gmra.mxu0 %v871
      %v976 = vpop.f32.mrf.mxu0
      %v977 = vadd.f32 0.0, %v976
      %978 = vmatmul.f32.gmra.mxu0 %v873
      %v979 = vpop.f32.mrf.mxu0
      %v980 = vadd.f32 0.0, %v979
      %981 = vmatmul.f32.gmra.mxu0 %v875
      %v982 = vpop.f32.mrf.mxu0
      %v983 = vadd.f32 0.0, %v982
      %984 = vmatmul.f32.gmra.mxu0 %v877
      %v985 = vpop.f32.mrf.mxu0
      %v986 = vadd.f32 0.0, %v985
      %987 = vmatmul.f32.gmra.mxu0 %v879
      %v988 = vpop.f32.mrf.mxu0
      %v989 = vadd.f32 0.0, %v988
      %990 = vmatmul.f32.gmra.mxu0 %v881
      %v991 = vpop.f32.mrf.mxu0
      %v992 = vadd.f32 0.0, %v991
      %993 = vmatmul.f32.gmra.mxu0 %v883
      %v994 = vpop.f32.mrf.mxu0
      %v995 = vadd.f32 0.0, %v994
      %996 = vmatmul.f32.gmra.mxu0 %v885
      %v997 = vpop.f32.mrf.mxu0
      %v998 = vadd.f32 0.0, %v997
      %999 = vmatmul.f32.gmra.mxu0 %v887
      %v1000 = vpop.f32.mrf.mxu0
      %v1001 = vadd.f32 0.0, %v1000
      %1002 = vmatmul.f32.gmra.mxu0 %v889
      %v1003 = vpop.f32.mrf.mxu0
      %v1004 = vadd.f32 0.0, %v1003
      %1005 = vmatmul.f32.gmra.mxu0 %v891
      %v1006 = vpop.f32.mrf.mxu0
      %v1007 = vadd.f32 0.0, %v1006
      %1008 = vdwg.mxu0
      %v1009 = vadd.f32 %v651, %v914
      %v1010 = vadd.f32 %v654, %v917
      %v1011 = vadd.f32 %v657, %v920
      %v1012 = vadd.f32 %v660, %v923
      %v1013 = vadd.f32 %v663, %v926
      %v1014 = vadd.f32 %v666, %v929
      %v1015 = vadd.f32 %v669, %v932
      %v1016 = vadd.f32 %v672, %v935
      %v1017 = vadd.f32 %v675, %v938
      %v1018 = vadd.f32 %v678, %v941
      %v1019 = vadd.f32 %v681, %v944
      %v1020 = vadd.f32 %v684, %v947
      %v1021 = vadd.f32 %v687, %v950
      %v1022 = vadd.f32 %v690, %v953
      %v1023 = vadd.f32 %v693, %v956
      %v1024 = vadd.f32 %v696, %v959
      %v1025 = vadd.f32 %v699, %v962
      %v1026 = vadd.f32 %v702, %v965
      %v1027 = vadd.f32 %v705, %v968
      %v1028 = vadd.f32 %v708, %v971
      %v1029 = vadd.f32 %v711, %v974
      %v1030 = vadd.f32 %v714, %v977
      %v1031 = vadd.f32 %v717, %v980
      %v1032 = vadd.f32 %v720, %v983
      %v1033 = vadd.f32 %v723, %v986
      %v1034 = vadd.f32 %v726, %v989
      %v1035 = vadd.f32 %v729, %v992
      %v1036 = vadd.f32 %v732, %v995
      %v1037 = vadd.f32 %v735, %v998
      %v1038 = vadd.f32 %v738, %v1001
      %v1039 = vadd.f32 %v741, %v1004
      %v1040 = vadd.f32 %v744, %v1007
      %s1041 = scalar_lea.vmem %s1, 12
      %v1042 = vld [vmem:[%s1041] sm:$0xf]
      %v1044 = vsel %vm384, %v246, 0
      %v1047 = vsel %vm384, %v247, 0
      %v1050 = vsel %vm449, %v1042, 0
      %1052 = vmatpush.msra.mxu0 0.0
      %1053 = vmatpush.msra.mxu0 0.0
      %1054 = vmatpush.msra.mxu0 0.0
      %1055 = vmatpush.msra.mxu0 0.0
      %1056 = vmatpush.msra.mxu0 0.0
      %1057 = vmatpush.msra.mxu0 0.0
      %1058 = vmatpush.msra.mxu0 0.0
      %1059 = vmatpush.msra.mxu0 0.0
      %1060 = vmatpush.msra.mxu0 0.0
      %1061 = vmatpush.msra.mxu0 0.0
      %1062 = vmatpush.msra.mxu0 0.0
      %1063 = vmatpush.msra.mxu0 0.0
      %1064 = vmatpush.msra.mxu0 0.0
      %1065 = vmatpush.msra.mxu0 0.0
      %1066 = vmatpush.msra.mxu0 0.0
      %1067 = vmatpush.msra.mxu0 %v1050
      %1068 = vmatmul.f32.gmra.mxu0 %v570
      %v1069 = vpop.f32.mrf.mxu0
      %v1070 = vadd.f32 0.0, %v1069
      %1071 = vmatmul.f32.gmra.mxu0 %v572
      %v1072 = vpop.f32.mrf.mxu0
      %v1073 = vadd.f32 0.0, %v1072
      %1074 = vmatmul.f32.gmra.mxu0 %v574
      %v1075 = vpop.f32.mrf.mxu0
      %v1076 = vadd.f32 0.0, %v1075
      %1077 = vmatmul.f32.gmra.mxu0 %v576
      %v1078 = vpop.f32.mrf.mxu0
      %v1079 = vadd.f32 0.0, %v1078
      %1080 = vmatmul.f32.gmra.mxu0 %v578
      %v1081 = vpop.f32.mrf.mxu0
      %v1082 = vadd.f32 0.0, %v1081
      %1083 = vmatmul.f32.gmra.mxu0 %v580
      %v1084 = vpop.f32.mrf.mxu0
      %v1085 = vadd.f32 0.0, %v1084
      %1086 = vmatmul.f32.gmra.mxu0 %v582
      %v1087 = vpop.f32.mrf.mxu0
      %v1088 = vadd.f32 0.0, %v1087
      %1089 = vmatmul.f32.gmra.mxu0 %v584
      %v1090 = vpop.f32.mrf.mxu0
      %v1091 = vadd.f32 0.0, %v1090
      %1092 = vmatmul.f32.gmra.mxu0 %v586
      %v1093 = vpop.f32.mrf.mxu0
      %v1094 = vadd.f32 0.0, %v1093
      %1095 = vmatmul.f32.gmra.mxu0 %v588
      %v1096 = vpop.f32.mrf.mxu0
      %v1097 = vadd.f32 0.0, %v1096
      %1098 = vmatmul.f32.gmra.mxu0 %v590
      %v1099 = vpop.f32.mrf.mxu0
      %v1100 = vadd.f32 0.0, %v1099
      %1101 = vmatmul.f32.gmra.mxu0 %v592
      %v1102 = vpop.f32.mrf.mxu0
      %v1103 = vadd.f32 0.0, %v1102
      %1104 = vmatmul.f32.gmra.mxu0 %v594
      %v1105 = vpop.f32.mrf.mxu0
      %v1106 = vadd.f32 0.0, %v1105
      %1107 = vmatmul.f32.gmra.mxu0 %v596
      %v1108 = vpop.f32.mrf.mxu0
      %v1109 = vadd.f32 0.0, %v1108
      %1110 = vmatmul.f32.gmra.mxu0 %v598
      %v1111 = vpop.f32.mrf.mxu0
      %v1112 = vadd.f32 0.0, %v1111
      %1113 = vmatmul.f32.gmra.mxu0 %v600
      %v1114 = vpop.f32.mrf.mxu0
      %v1115 = vadd.f32 0.0, %v1114
      %1116 = vmatmul.f32.gmra.mxu0 %v602
      %v1117 = vpop.f32.mrf.mxu0
      %v1118 = vadd.f32 0.0, %v1117
      %1119 = vmatmul.f32.gmra.mxu0 %v604
      %v1120 = vpop.f32.mrf.mxu0
      %v1121 = vadd.f32 0.0, %v1120
      %1122 = vmatmul.f32.gmra.mxu0 %v606
      %v1123 = vpop.f32.mrf.mxu0
      %v1124 = vadd.f32 0.0, %v1123
      %1125 = vmatmul.f32.gmra.mxu0 %v608
      %v1126 = vpop.f32.mrf.mxu0
      %v1127 = vadd.f32 0.0, %v1126
      %1128 = vmatmul.f32.gmra.mxu0 %v610
      %v1129 = vpop.f32.mrf.mxu0
      %v1130 = vadd.f32 0.0, %v1129
      %1131 = vmatmul.f32.gmra.mxu0 %v612
      %v1132 = vpop.f32.mrf.mxu0
      %v1133 = vadd.f32 0.0, %v1132
      %1134 = vmatmul.f32.gmra.mxu0 %v614
      %v1135 = vpop.f32.mrf.mxu0
      %v1136 = vadd.f32 0.0, %v1135
      %1137 = vmatmul.f32.gmra.mxu0 %v616
      %v1138 = vpop.f32.mrf.mxu0
      %v1139 = vadd.f32 0.0, %v1138
      %1140 = vmatmul.f32.gmra.mxu0 %v618
      %v1141 = vpop.f32.mrf.mxu0
      %v1142 = vadd.f32 0.0, %v1141
      %1143 = vmatmul.f32.gmra.mxu0 %v620
      %v1144 = vpop.f32.mrf.mxu0
      %v1145 = vadd.f32 0.0, %v1144
      %1146 = vmatmul.f32.gmra.mxu0 %v622
      %v1147 = vpop.f32.mrf.mxu0
      %v1148 = vadd.f32 0.0, %v1147
      %1149 = vmatmul.f32.gmra.mxu0 %v624
      %v1150 = vpop.f32.mrf.mxu0
      %v1151 = vadd.f32 0.0, %v1150
      %1152 = vmatmul.f32.gmra.mxu0 %v626
      %v1153 = vpop.f32.mrf.mxu0
      %v1154 = vadd.f32 0.0, %v1153
      %1155 = vmatmul.f32.gmra.mxu0 %v628
      %v1156 = vpop.f32.mrf.mxu0
      %v1157 = vadd.f32 0.0, %v1156
      %1158 = vmatmul.f32.gmra.mxu0 %v1044
      %v1159 = vpop.f32.mrf.mxu0
      %v1160 = vadd.f32 0.0, %v1159
      %1161 = vmatmul.f32.gmra.mxu0 %v1047
      %v1162 = vpop.f32.mrf.mxu0
      %v1163 = vadd.f32 0.0, %v1162
      %1164 = vdwg.mxu0
      %v1165 = vadd.f32 %v1009, %v1070
      %v1166 = vadd.f32 %v1010, %v1073
      %v1167 = vadd.f32 %v1011, %v1076
      %v1168 = vadd.f32 %v1012, %v1079
      %v1169 = vadd.f32 %v1013, %v1082
      %v1170 = vadd.f32 %v1014, %v1085
      %v1171 = vadd.f32 %v1015, %v1088
      %v1172 = vadd.f32 %v1016, %v1091
      %v1173 = vadd.f32 %v1017, %v1094
      %v1174 = vadd.f32 %v1018, %v1097
      %v1175 = vadd.f32 %v1019, %v1100
      %v1176 = vadd.f32 %v1020, %v1103
      %v1177 = vadd.f32 %v1021, %v1106
      %v1178 = vadd.f32 %v1022, %v1109
      %v1179 = vadd.f32 %v1023, %v1112
      %v1180 = vadd.f32 %v1024, %v1115
      %v1181 = vadd.f32 %v1025, %v1118
      %v1182 = vadd.f32 %v1026, %v1121
      %v1183 = vadd.f32 %v1027, %v1124
      %v1184 = vadd.f32 %v1028, %v1127
      %v1185 = vadd.f32 %v1029, %v1130
      %v1186 = vadd.f32 %v1030, %v1133
      %v1187 = vadd.f32 %v1031, %v1136
      %v1188 = vadd.f32 %v1032, %v1139
      %v1189 = vadd.f32 %v1033, %v1142
      %v1190 = vadd.f32 %v1034, %v1145
      %v1191 = vadd.f32 %v1035, %v1148
      %v1192 = vadd.f32 %v1036, %v1151
      %v1193 = vadd.f32 %v1037, %v1154
      %v1194 = vadd.f32 %v1038, %v1157
      %v1195 = vadd.f32 %v1039, %v1160
      %v1196 = vadd.f32 %v1040, %v1163
      %v1198 = vrot.slane %v246, 1
      %v1199 = vrot.slane %v247, 1
      %v1200 = vsel %vm301, %v1198, %v1199
      %v1201 = vrot.slane %v248, 1
      %v1202 = vsel %vm301, %v1199, %v1201
      %s1203 = scalar_lea.vmem %s1, 16
      %v1204 = vld [vmem:[%s1203] sm:$0xf]
      %v1205 = vsel %vm384, %v1200, 0
      %v1207 = vsel %vm384, %v1202, 0
      %v1210 = vsel %vm449, %v1204, 0
      %1212 = vmatpush.msra.mxu0 0.0
      %1213 = vmatpush.msra.mxu0 0.0
      %1214 = vmatpush.msra.mxu0 0.0
      %1215 = vmatpush.msra.mxu0 0.0
      %1216 = vmatpush.msra.mxu0 0.0
      %1217 = vmatpush.msra.mxu0 0.0
      %1218 = vmatpush.msra.mxu0 0.0
      %1219 = vmatpush.msra.mxu0 0.0
      %1220 = vmatpush.msra.mxu0 0.0
      %1221 = vmatpush.msra.mxu0 0.0
      %1222 = vmatpush.msra.mxu0 0.0
      %1223 = vmatpush.msra.mxu0 0.0
      %1224 = vmatpush.msra.mxu0 0.0
      %1225 = vmatpush.msra.mxu0 0.0
      %1226 = vmatpush.msra.mxu0 0.0
      %1227 = vmatpush.msra.mxu0 %v1210
      %1228 = vmatmul.f32.gmra.mxu0 %v389
      %v1229 = vpop.f32.mrf.mxu0
      %v1230 = vadd.f32 0.0, %v1229
      %1231 = vmatmul.f32.gmra.mxu0 %v391
      %v1232 = vpop.f32.mrf.mxu0
      %v1233 = vadd.f32 0.0, %v1232
      %1234 = vmatmul.f32.gmra.mxu0 %v393
      %v1235 = vpop.f32.mrf.mxu0
      %v1236 = vadd.f32 0.0, %v1235
      %1237 = vmatmul.f32.gmra.mxu0 %v395
      %v1238 = vpop.f32.mrf.mxu0
      %v1239 = vadd.f32 0.0, %v1238
      %1240 = vmatmul.f32.gmra.mxu0 %v397
      %v1241 = vpop.f32.mrf.mxu0
      %v1242 = vadd.f32 0.0, %v1241
      %1243 = vmatmul.f32.gmra.mxu0 %v399
      %v1244 = vpop.f32.mrf.mxu0
      %v1245 = vadd.f32 0.0, %v1244
      %1246 = vmatmul.f32.gmra.mxu0 %v401
      %v1247 = vpop.f32.mrf.mxu0
      %v1248 = vadd.f32 0.0, %v1247
      %1249 = vmatmul.f32.gmra.mxu0 %v403
      %v1250 = vpop.f32.mrf.mxu0
      %v1251 = vadd.f32 0.0, %v1250
      %1252 = vmatmul.f32.gmra.mxu0 %v405
      %v1253 = vpop.f32.mrf.mxu0
      %v1254 = vadd.f32 0.0, %v1253
      %1255 = vmatmul.f32.gmra.mxu0 %v407
      %v1256 = vpop.f32.mrf.mxu0
      %v1257 = vadd.f32 0.0, %v1256
      %1258 = vmatmul.f32.gmra.mxu0 %v409
      %v1259 = vpop.f32.mrf.mxu0
      %v1260 = vadd.f32 0.0, %v1259
      %1261 = vmatmul.f32.gmra.mxu0 %v411
      %v1262 = vpop.f32.mrf.mxu0
      %v1263 = vadd.f32 0.0, %v1262
      %1264 = vmatmul.f32.gmra.mxu0 %v413
      %v1265 = vpop.f32.mrf.mxu0
      %v1266 = vadd.f32 0.0, %v1265
      %1267 = vmatmul.f32.gmra.mxu0 %v415
      %v1268 = vpop.f32.mrf.mxu0
      %v1269 = vadd.f32 0.0, %v1268
      %1270 = vmatmul.f32.gmra.mxu0 %v417
      %v1271 = vpop.f32.mrf.mxu0
      %v1272 = vadd.f32 0.0, %v1271
      %1273 = vmatmul.f32.gmra.mxu0 %v419
      %v1274 = vpop.f32.mrf.mxu0
      %v1275 = vadd.f32 0.0, %v1274
      %1276 = vmatmul.f32.gmra.mxu0 %v421
      %v1277 = vpop.f32.mrf.mxu0
      %v1278 = vadd.f32 0.0, %v1277
      %1279 = vmatmul.f32.gmra.mxu0 %v423
      %v1280 = vpop.f32.mrf.mxu0
      %v1281 = vadd.f32 0.0, %v1280
      %1282 = vmatmul.f32.gmra.mxu0 %v425
      %v1283 = vpop.f32.mrf.mxu0
      %v1284 = vadd.f32 0.0, %v1283
      %1285 = vmatmul.f32.gmra.mxu0 %v427
      %v1286 = vpop.f32.mrf.mxu0
      %v1287 = vadd.f32 0.0, %v1286
      %1288 = vmatmul.f32.gmra.mxu0 %v429
      %v1289 = vpop.f32.mrf.mxu0
      %v1290 = vadd.f32 0.0, %v1289
      %1291 = vmatmul.f32.gmra.mxu0 %v431
      %v1292 = vpop.f32.mrf.mxu0
      %v1293 = vadd.f32 0.0, %v1292
      %1294 = vmatmul.f32.gmra.mxu0 %v433
      %v1295 = vpop.f32.mrf.mxu0
      %v1296 = vadd.f32 0.0, %v1295
      %1297 = vmatmul.f32.gmra.mxu0 %v435
      %v1298 = vpop.f32.mrf.mxu0
      %v1299 = vadd.f32 0.0, %v1298
      %1300 = vmatmul.f32.gmra.mxu0 %v437
      %v1301 = vpop.f32.mrf.mxu0
      %v1302 = vadd.f32 0.0, %v1301
      %1303 = vmatmul.f32.gmra.mxu0 %v439
      %v1304 = vpop.f32.mrf.mxu0
      %v1305 = vadd.f32 0.0, %v1304
      %1306 = vmatmul.f32.gmra.mxu0 %v441
      %v1307 = vpop.f32.mrf.mxu0
      %v1308 = vadd.f32 0.0, %v1307
      %1309 = vmatmul.f32.gmra.mxu0 %v443
      %v1310 = vpop.f32.mrf.mxu0
      %v1311 = vadd.f32 0.0, %v1310
      %1312 = vmatmul.f32.gmra.mxu0 %v445
      %v1313 = vpop.f32.mrf.mxu0
      %v1314 = vadd.f32 0.0, %v1313
      %1315 = vmatmul.f32.gmra.mxu0 %v447
      %v1316 = vpop.f32.mrf.mxu0
      %v1317 = vadd.f32 0.0, %v1316
      %1318 = vmatmul.f32.gmra.mxu0 %v1205
      %v1319 = vpop.f32.mrf.mxu0
      %v1320 = vadd.f32 0.0, %v1319
      %1321 = vmatmul.f32.gmra.mxu0 %v1207
      %v1322 = vpop.f32.mrf.mxu0
      %v1323 = vadd.f32 0.0, %v1322
      %1324 = vdwg.mxu0
      %v1325 = vadd.f32 %v1165, %v1230
      %v1326 = vadd.f32 %v1166, %v1233
      %v1327 = vadd.f32 %v1167, %v1236
      %v1328 = vadd.f32 %v1168, %v1239
      %v1329 = vadd.f32 %v1169, %v1242
      %v1330 = vadd.f32 %v1170, %v1245
      %v1331 = vadd.f32 %v1171, %v1248
      %v1332 = vadd.f32 %v1172, %v1251
      %v1333 = vadd.f32 %v1173, %v1254
      %v1334 = vadd.f32 %v1174, %v1257
      %v1335 = vadd.f32 %v1175, %v1260
      %v1336 = vadd.f32 %v1176, %v1263
      %v1337 = vadd.f32 %v1177, %v1266
      %v1338 = vadd.f32 %v1178, %v1269
      %v1339 = vadd.f32 %v1179, %v1272
      %v1340 = vadd.f32 %v1180, %v1275
      %v1341 = vadd.f32 %v1181, %v1278
      %v1342 = vadd.f32 %v1182, %v1281
      %v1343 = vadd.f32 %v1183, %v1284
      %v1344 = vadd.f32 %v1184, %v1287
      %v1345 = vadd.f32 %v1185, %v1290
      %v1346 = vadd.f32 %v1186, %v1293
      %v1347 = vadd.f32 %v1187, %v1296
      %v1348 = vadd.f32 %v1188, %v1299
      %v1349 = vadd.f32 %v1189, %v1302
      %v1350 = vadd.f32 %v1190, %v1305
      %v1351 = vadd.f32 %v1191, %v1308
      %v1352 = vadd.f32 %v1192, %v1311
      %v1353 = vadd.f32 %v1193, %v1314
      %v1354 = vadd.f32 %v1194, %v1317
      %v1355 = vadd.f32 %v1195, %v1320
      %v1356 = vadd.f32 %v1196, %v1323
      %v1357 = vrot.slane %v246, 2
      %v1358 = vrot.slane %v247, 2
      %v1359 = vsel %vm746, %v1357, %v1358
      %v1360 = vrot.slane %v248, 2
      %v1361 = vsel %vm746, %v1358, %v1360
      %s1362 = scalar_lea.vmem %s1, 20
      %v1363 = vld [vmem:[%s1362] sm:$0xf]
      %v1364 = vsel %vm384, %v1359, 0
      %v1366 = vsel %vm384, %v1361, 0
      %v1369 = vsel %vm449, %v1363, 0
      %1371 = vmatpush.msra.mxu0 0.0
      %1372 = vmatpush.msra.mxu0 0.0
      %1373 = vmatpush.msra.mxu0 0.0
      %1374 = vmatpush.msra.mxu0 0.0
      %1375 = vmatpush.msra.mxu0 0.0
      %1376 = vmatpush.msra.mxu0 0.0
      %1377 = vmatpush.msra.mxu0 0.0
      %1378 = vmatpush.msra.mxu0 0.0
      %1379 = vmatpush.msra.mxu0 0.0
      %1380 = vmatpush.msra.mxu0 0.0
      %1381 = vmatpush.msra.mxu0 0.0
      %1382 = vmatpush.msra.mxu0 0.0
      %1383 = vmatpush.msra.mxu0 0.0
      %1384 = vmatpush.msra.mxu0 0.0
      %1385 = vmatpush.msra.mxu0 0.0
      %1386 = vmatpush.msra.mxu0 %v1369
      %1387 = vmatmul.f32.gmra.mxu0 %v833
      %v1388 = vpop.f32.mrf.mxu0
      %v1389 = vadd.f32 0.0, %v1388
      %1390 = vmatmul.f32.gmra.mxu0 %v835
      %v1391 = vpop.f32.mrf.mxu0
      %v1392 = vadd.f32 0.0, %v1391
      %1393 = vmatmul.f32.gmra.mxu0 %v837
      %v1394 = vpop.f32.mrf.mxu0
      %v1395 = vadd.f32 0.0, %v1394
      %1396 = vmatmul.f32.gmra.mxu0 %v839
      %v1397 = vpop.f32.mrf.mxu0
      %v1398 = vadd.f32 0.0, %v1397
      %1399 = vmatmul.f32.gmra.mxu0 %v841
      %v1400 = vpop.f32.mrf.mxu0
      %v1401 = vadd.f32 0.0, %v1400
      %1402 = vmatmul.f32.gmra.mxu0 %v843
      %v1403 = vpop.f32.mrf.mxu0
      %v1404 = vadd.f32 0.0, %v1403
      %1405 = vmatmul.f32.gmra.mxu0 %v845
      %v1406 = vpop.f32.mrf.mxu0
      %v1407 = vadd.f32 0.0, %v1406
      %1408 = vmatmul.f32.gmra.mxu0 %v847
      %v1409 = vpop.f32.mrf.mxu0
      %v1410 = vadd.f32 0.0, %v1409
      %1411 = vmatmul.f32.gmra.mxu0 %v849
      %v1412 = vpop.f32.mrf.mxu0
      %v1413 = vadd.f32 0.0, %v1412
      %1414 = vmatmul.f32.gmra.mxu0 %v851
      %v1415 = vpop.f32.mrf.mxu0
      %v1416 = vadd.f32 0.0, %v1415
      %1417 = vmatmul.f32.gmra.mxu0 %v853
      %v1418 = vpop.f32.mrf.mxu0
      %v1419 = vadd.f32 0.0, %v1418
      %1420 = vmatmul.f32.gmra.mxu0 %v855
      %v1421 = vpop.f32.mrf.mxu0
      %v1422 = vadd.f32 0.0, %v1421
      %1423 = vmatmul.f32.gmra.mxu0 %v857
      %v1424 = vpop.f32.mrf.mxu0
      %v1425 = vadd.f32 0.0, %v1424
      %1426 = vmatmul.f32.gmra.mxu0 %v859
      %v1427 = vpop.f32.mrf.mxu0
      %v1428 = vadd.f32 0.0, %v1427
      %1429 = vmatmul.f32.gmra.mxu0 %v861
      %v1430 = vpop.f32.mrf.mxu0
      %v1431 = vadd.f32 0.0, %v1430
      %1432 = vmatmul.f32.gmra.mxu0 %v863
      %v1433 = vpop.f32.mrf.mxu0
      %v1434 = vadd.f32 0.0, %v1433
      %1435 = vmatmul.f32.gmra.mxu0 %v865
      %v1436 = vpop.f32.mrf.mxu0
      %v1437 = vadd.f32 0.0, %v1436
      %1438 = vmatmul.f32.gmra.mxu0 %v867
      %v1439 = vpop.f32.mrf.mxu0
      %v1440 = vadd.f32 0.0, %v1439
      %1441 = vmatmul.f32.gmra.mxu0 %v869
      %v1442 = vpop.f32.mrf.mxu0
      %v1443 = vadd.f32 0.0, %v1442
      %1444 = vmatmul.f32.gmra.mxu0 %v871
      %v1445 = vpop.f32.mrf.mxu0
      %v1446 = vadd.f32 0.0, %v1445
      %1447 = vmatmul.f32.gmra.mxu0 %v873
      %v1448 = vpop.f32.mrf.mxu0
      %v1449 = vadd.f32 0.0, %v1448
      %1450 = vmatmul.f32.gmra.mxu0 %v875
      %v1451 = vpop.f32.mrf.mxu0
      %v1452 = vadd.f32 0.0, %v1451
      %1453 = vmatmul.f32.gmra.mxu0 %v877
      %v1454 = vpop.f32.mrf.mxu0
      %v1455 = vadd.f32 0.0, %v1454
      %1456 = vmatmul.f32.gmra.mxu0 %v879
      %v1457 = vpop.f32.mrf.mxu0
      %v1458 = vadd.f32 0.0, %v1457
      %1459 = vmatmul.f32.gmra.mxu0 %v881
      %v1460 = vpop.f32.mrf.mxu0
      %v1461 = vadd.f32 0.0, %v1460
      %1462 = vmatmul.f32.gmra.mxu0 %v883
      %v1463 = vpop.f32.mrf.mxu0
      %v1464 = vadd.f32 0.0, %v1463
      %1465 = vmatmul.f32.gmra.mxu0 %v885
      %v1466 = vpop.f32.mrf.mxu0
      %v1467 = vadd.f32 0.0, %v1466
      %1468 = vmatmul.f32.gmra.mxu0 %v887
      %v1469 = vpop.f32.mrf.mxu0
      %v1470 = vadd.f32 0.0, %v1469
      %1471 = vmatmul.f32.gmra.mxu0 %v889
      %v1472 = vpop.f32.mrf.mxu0
      %v1473 = vadd.f32 0.0, %v1472
      %1474 = vmatmul.f32.gmra.mxu0 %v891
      %v1475 = vpop.f32.mrf.mxu0
      %v1476 = vadd.f32 0.0, %v1475
      %1477 = vmatmul.f32.gmra.mxu0 %v1364
      %v1478 = vpop.f32.mrf.mxu0
      %v1479 = vadd.f32 0.0, %v1478
      %1480 = vmatmul.f32.gmra.mxu0 %v1366
      %v1481 = vpop.f32.mrf.mxu0
      %v1482 = vadd.f32 0.0, %v1481
      %1483 = vdwg.mxu0
      %v1484 = vadd.f32 %v1325, %v1389
      %v1485 = vadd.f32 %v1326, %v1392
      %v1486 = vadd.f32 %v1327, %v1395
      %v1487 = vadd.f32 %v1328, %v1398
      %v1488 = vadd.f32 %v1329, %v1401
      %v1489 = vadd.f32 %v1330, %v1404
      %v1490 = vadd.f32 %v1331, %v1407
      %v1491 = vadd.f32 %v1332, %v1410
      %v1492 = vadd.f32 %v1333, %v1413
      %v1493 = vadd.f32 %v1334, %v1416
      %v1494 = vadd.f32 %v1335, %v1419
      %v1495 = vadd.f32 %v1336, %v1422
      %v1496 = vadd.f32 %v1337, %v1425
      %v1497 = vadd.f32 %v1338, %v1428
      %v1498 = vadd.f32 %v1339, %v1431
      %v1499 = vadd.f32 %v1340, %v1434
      %v1500 = vadd.f32 %v1341, %v1437
      %v1501 = vadd.f32 %v1342, %v1440
      %v1502 = vadd.f32 %v1343, %v1443
      %v1503 = vadd.f32 %v1344, %v1446
      %v1504 = vadd.f32 %v1345, %v1449
      %v1505 = vadd.f32 %v1346, %v1452
      %v1506 = vadd.f32 %v1347, %v1455
      %v1507 = vadd.f32 %v1348, %v1458
      %v1508 = vadd.f32 %v1349, %v1461
      %v1509 = vadd.f32 %v1350, %v1464
      %v1510 = vadd.f32 %v1351, %v1467
      %v1511 = vadd.f32 %v1352, %v1470
      %v1512 = vadd.f32 %v1353, %v1473
      %v1513 = vadd.f32 %v1354, %v1476
      %v1514 = vadd.f32 %v1355, %v1479
      %v1515 = vadd.f32 %v1356, %v1482
      %s1516 = scalar_lea.vmem %s1, 24
      %v1517 = vld [vmem:[%s1516] sm:$0xf]
      %v1519 = vsel %vm384, %v249, 0
      %v1522 = vsel %vm384, %v250, 0
      %v1525 = vsel %vm449, %v1517, 0
      %1527 = vmatpush.msra.mxu0 0.0
      %1528 = vmatpush.msra.mxu0 0.0
      %1529 = vmatpush.msra.mxu0 0.0
      %1530 = vmatpush.msra.mxu0 0.0
      %1531 = vmatpush.msra.mxu0 0.0
      %1532 = vmatpush.msra.mxu0 0.0
      %1533 = vmatpush.msra.mxu0 0.0
      %1534 = vmatpush.msra.mxu0 0.0
      %1535 = vmatpush.msra.mxu0 0.0
      %1536 = vmatpush.msra.mxu0 0.0
      %1537 = vmatpush.msra.mxu0 0.0
      %1538 = vmatpush.msra.mxu0 0.0
      %1539 = vmatpush.msra.mxu0 0.0
      %1540 = vmatpush.msra.mxu0 0.0
      %1541 = vmatpush.msra.mxu0 0.0
      %1542 = vmatpush.msra.mxu0 %v1525
      %1543 = vmatmul.f32.gmra.mxu0 %v574
      %v1544 = vpop.f32.mrf.mxu0
      %v1545 = vadd.f32 0.0, %v1544
      %1546 = vmatmul.f32.gmra.mxu0 %v576
      %v1547 = vpop.f32.mrf.mxu0
      %v1548 = vadd.f32 0.0, %v1547
      %1549 = vmatmul.f32.gmra.mxu0 %v578
      %v1550 = vpop.f32.mrf.mxu0
      %v1551 = vadd.f32 0.0, %v1550
      %1552 = vmatmul.f32.gmra.mxu0 %v580
      %v1553 = vpop.f32.mrf.mxu0
      %v1554 = vadd.f32 0.0, %v1553
      %1555 = vmatmul.f32.gmra.mxu0 %v582
      %v1556 = vpop.f32.mrf.mxu0
      %v1557 = vadd.f32 0.0, %v1556
      %1558 = vmatmul.f32.gmra.mxu0 %v584
      %v1559 = vpop.f32.mrf.mxu0
      %v1560 = vadd.f32 0.0, %v1559
      %1561 = vmatmul.f32.gmra.mxu0 %v586
      %v1562 = vpop.f32.mrf.mxu0
      %v1563 = vadd.f32 0.0, %v1562
      %1564 = vmatmul.f32.gmra.mxu0 %v588
      %v1565 = vpop.f32.mrf.mxu0
      %v1566 = vadd.f32 0.0, %v1565
      %1567 = vmatmul.f32.gmra.mxu0 %v590
      %v1568 = vpop.f32.mrf.mxu0
      %v1569 = vadd.f32 0.0, %v1568
      %1570 = vmatmul.f32.gmra.mxu0 %v592
      %v1571 = vpop.f32.mrf.mxu0
      %v1572 = vadd.f32 0.0, %v1571
      %1573 = vmatmul.f32.gmra.mxu0 %v594
      %v1574 = vpop.f32.mrf.mxu0
      %v1575 = vadd.f32 0.0, %v1574
      %1576 = vmatmul.f32.gmra.mxu0 %v596
      %v1577 = vpop.f32.mrf.mxu0
      %v1578 = vadd.f32 0.0, %v1577
      %1579 = vmatmul.f32.gmra.mxu0 %v598
      %v1580 = vpop.f32.mrf.mxu0
      %v1581 = vadd.f32 0.0, %v1580
      %1582 = vmatmul.f32.gmra.mxu0 %v600
      %v1583 = vpop.f32.mrf.mxu0
      %v1584 = vadd.f32 0.0, %v1583
      %1585 = vmatmul.f32.gmra.mxu0 %v602
      %v1586 = vpop.f32.mrf.mxu0
      %v1587 = vadd.f32 0.0, %v1586
      %1588 = vmatmul.f32.gmra.mxu0 %v604
      %v1589 = vpop.f32.mrf.mxu0
      %v1590 = vadd.f32 0.0, %v1589
      %1591 = vmatmul.f32.gmra.mxu0 %v606
      %v1592 = vpop.f32.mrf.mxu0
      %v1593 = vadd.f32 0.0, %v1592
      %1594 = vmatmul.f32.gmra.mxu0 %v608
      %v1595 = vpop.f32.mrf.mxu0
      %v1596 = vadd.f32 0.0, %v1595
      %1597 = vmatmul.f32.gmra.mxu0 %v610
      %v1598 = vpop.f32.mrf.mxu0
      %v1599 = vadd.f32 0.0, %v1598
      %1600 = vmatmul.f32.gmra.mxu0 %v612
      %v1601 = vpop.f32.mrf.mxu0
      %v1602 = vadd.f32 0.0, %v1601
      %1603 = vmatmul.f32.gmra.mxu0 %v614
      %v1604 = vpop.f32.mrf.mxu0
      %v1605 = vadd.f32 0.0, %v1604
      %1606 = vmatmul.f32.gmra.mxu0 %v616
      %v1607 = vpop.f32.mrf.mxu0
      %v1608 = vadd.f32 0.0, %v1607
      %1609 = vmatmul.f32.gmra.mxu0 %v618
      %v1610 = vpop.f32.mrf.mxu0
      %v1611 = vadd.f32 0.0, %v1610
      %1612 = vmatmul.f32.gmra.mxu0 %v620
      %v1613 = vpop.f32.mrf.mxu0
      %v1614 = vadd.f32 0.0, %v1613
      %1615 = vmatmul.f32.gmra.mxu0 %v622
      %v1616 = vpop.f32.mrf.mxu0
      %v1617 = vadd.f32 0.0, %v1616
      %1618 = vmatmul.f32.gmra.mxu0 %v624
      %v1619 = vpop.f32.mrf.mxu0
      %v1620 = vadd.f32 0.0, %v1619
      %1621 = vmatmul.f32.gmra.mxu0 %v626
      %v1622 = vpop.f32.mrf.mxu0
      %v1623 = vadd.f32 0.0, %v1622
      %1624 = vmatmul.f32.gmra.mxu0 %v628
      %v1625 = vpop.f32.mrf.mxu0
      %v1626 = vadd.f32 0.0, %v1625
      %1627 = vmatmul.f32.gmra.mxu0 %v1044
      %v1628 = vpop.f32.mrf.mxu0
      %v1629 = vadd.f32 0.0, %v1628
      %1630 = vmatmul.f32.gmra.mxu0 %v1047
      %v1631 = vpop.f32.mrf.mxu0
      %v1632 = vadd.f32 0.0, %v1631
      %1633 = vmatmul.f32.gmra.mxu0 %v1519
      %v1634 = vpop.f32.mrf.mxu0
      %v1635 = vadd.f32 0.0, %v1634
      %1636 = vmatmul.f32.gmra.mxu0 %v1522
      %v1637 = vpop.f32.mrf.mxu0
      %v1638 = vadd.f32 0.0, %v1637
      %1639 = vdwg.mxu0
      %v1640 = vadd.f32 %v1484, %v1545
      %v1641 = vadd.f32 %v1485, %v1548
      %v1642 = vadd.f32 %v1486, %v1551
      %v1643 = vadd.f32 %v1487, %v1554
      %v1644 = vadd.f32 %v1488, %v1557
      %v1645 = vadd.f32 %v1489, %v1560
      %v1646 = vadd.f32 %v1490, %v1563
      %v1647 = vadd.f32 %v1491, %v1566
      %v1648 = vadd.f32 %v1492, %v1569
      %v1649 = vadd.f32 %v1493, %v1572
      %v1650 = vadd.f32 %v1494, %v1575
      %v1651 = vadd.f32 %v1495, %v1578
      %v1652 = vadd.f32 %v1496, %v1581
      %v1653 = vadd.f32 %v1497, %v1584
      %v1654 = vadd.f32 %v1498, %v1587
      %v1655 = vadd.f32 %v1499, %v1590
      %v1656 = vadd.f32 %v1500, %v1593
      %v1657 = vadd.f32 %v1501, %v1596
      %v1658 = vadd.f32 %v1502, %v1599
      %v1659 = vadd.f32 %v1503, %v1602
      %v1660 = vadd.f32 %v1504, %v1605
      %v1661 = vadd.f32 %v1505, %v1608
      %v1662 = vadd.f32 %v1506, %v1611
      %v1663 = vadd.f32 %v1507, %v1614
      %v1664 = vadd.f32 %v1508, %v1617
      %v1665 = vadd.f32 %v1509, %v1620
      %v1666 = vadd.f32 %v1510, %v1623
      %v1667 = vadd.f32 %v1511, %v1626
      %v1668 = vadd.f32 %v1512, %v1629
      %v1669 = vadd.f32 %v1513, %v1632
      %v1670 = vadd.f32 %v1514, %v1635
      %v1671 = vadd.f32 %v1515, %v1638
      %v1673 = vrot.slane %v249, 1
      %v1674 = vrot.slane %v250, 1
      %v1675 = vsel %vm301, %v1673, %v1674
      %v1676 = vrot.slane %v251, 1
      %v1677 = vsel %vm301, %v1674, %v1676
      %s1678 = scalar_lea.vmem %s1, 28
      %v1679 = vld [vmem:[%s1678] sm:$0xf]
      %v1680 = vsel %vm384, %v1675, 0
      %v1682 = vsel %vm384, %v1677, 0
      %v1685 = vsel %vm449, %v1679, 0
      %1687 = vmatpush.msra.mxu0 0.0
      %1688 = vmatpush.msra.mxu0 0.0
      %1689 = vmatpush.msra.mxu0 0.0
      %1690 = vmatpush.msra.mxu0 0.0
      %1691 = vmatpush.msra.mxu0 0.0
      %1692 = vmatpush.msra.mxu0 0.0
      %1693 = vmatpush.msra.mxu0 0.0
      %1694 = vmatpush.msra.mxu0 0.0
      %1695 = vmatpush.msra.mxu0 0.0
      %1696 = vmatpush.msra.mxu0 0.0
      %1697 = vmatpush.msra.mxu0 0.0
      %1698 = vmatpush.msra.mxu0 0.0
      %1699 = vmatpush.msra.mxu0 0.0
      %1700 = vmatpush.msra.mxu0 0.0
      %1701 = vmatpush.msra.mxu0 0.0
      %1702 = vmatpush.msra.mxu0 %v1685
      %1703 = vmatmul.f32.gmra.mxu0 %v393
      %v1704 = vpop.f32.mrf.mxu0
      %v1705 = vadd.f32 0.0, %v1704
      %1706 = vmatmul.f32.gmra.mxu0 %v395
      %v1707 = vpop.f32.mrf.mxu0
      %v1708 = vadd.f32 0.0, %v1707
      %1709 = vmatmul.f32.gmra.mxu0 %v397
      %v1710 = vpop.f32.mrf.mxu0
      %v1711 = vadd.f32 0.0, %v1710
      %1712 = vmatmul.f32.gmra.mxu0 %v399
      %v1713 = vpop.f32.mrf.mxu0
      %v1714 = vadd.f32 0.0, %v1713
      %1715 = vmatmul.f32.gmra.mxu0 %v401
      %v1716 = vpop.f32.mrf.mxu0
      %v1717 = vadd.f32 0.0, %v1716
      %1718 = vmatmul.f32.gmra.mxu0 %v403
      %v1719 = vpop.f32.mrf.mxu0
      %v1720 = vadd.f32 0.0, %v1719
      %1721 = vmatmul.f32.gmra.mxu0 %v405
      %v1722 = vpop.f32.mrf.mxu0
      %v1723 = vadd.f32 0.0, %v1722
      %1724 = vmatmul.f32.gmra.mxu0 %v407
      %v1725 = vpop.f32.mrf.mxu0
      %v1726 = vadd.f32 0.0, %v1725
      %1727 = vmatmul.f32.gmra.mxu0 %v409
      %v1728 = vpop.f32.mrf.mxu0
      %v1729 = vadd.f32 0.0, %v1728
      %1730 = vmatmul.f32.gmra.mxu0 %v411
      %v1731 = vpop.f32.mrf.mxu0
      %v1732 = vadd.f32 0.0, %v1731
      %1733 = vmatmul.f32.gmra.mxu0 %v413
      %v1734 = vpop.f32.mrf.mxu0
      %v1735 = vadd.f32 0.0, %v1734
      %1736 = vmatmul.f32.gmra.mxu0 %v415
      %v1737 = vpop.f32.mrf.mxu0
      %v1738 = vadd.f32 0.0, %v1737
      %1739 = vmatmul.f32.gmra.mxu0 %v417
      %v1740 = vpop.f32.mrf.mxu0
      %v1741 = vadd.f32 0.0, %v1740
      %1742 = vmatmul.f32.gmra.mxu0 %v419
      %v1743 = vpop.f32.mrf.mxu0
      %v1744 = vadd.f32 0.0, %v1743
      %1745 = vmatmul.f32.gmra.mxu0 %v421
      %v1746 = vpop.f32.mrf.mxu0
      %v1747 = vadd.f32 0.0, %v1746
      %1748 = vmatmul.f32.gmra.mxu0 %v423
      %v1749 = vpop.f32.mrf.mxu0
      %v1750 = vadd.f32 0.0, %v1749
      %1751 = vmatmul.f32.gmra.mxu0 %v425
      %v1752 = vpop.f32.mrf.mxu0
      %v1753 = vadd.f32 0.0, %v1752
      %1754 = vmatmul.f32.gmra.mxu0 %v427
      %v1755 = vpop.f32.mrf.mxu0
      %v1756 = vadd.f32 0.0, %v1755
      %1757 = vmatmul.f32.gmra.mxu0 %v429
      %v1758 = vpop.f32.mrf.mxu0
      %v1759 = vadd.f32 0.0, %v1758
      %1760 = vmatmul.f32.gmra.mxu0 %v431
      %v1761 = vpop.f32.mrf.mxu0
      %v1762 = vadd.f32 0.0, %v1761
      %1763 = vmatmul.f32.gmra.mxu0 %v433
      %v1764 = vpop.f32.mrf.mxu0
      %v1765 = vadd.f32 0.0, %v1764
      %1766 = vmatmul.f32.gmra.mxu0 %v435
      %v1767 = vpop.f32.mrf.mxu0
      %v1768 = vadd.f32 0.0, %v1767
      %1769 = vmatmul.f32.gmra.mxu0 %v437
      %v1770 = vpop.f32.mrf.mxu0
      %v1771 = vadd.f32 0.0, %v1770
      %1772 = vmatmul.f32.gmra.mxu0 %v439
      %v1773 = vpop.f32.mrf.mxu0
      %v1774 = vadd.f32 0.0, %v1773
      %1775 = vmatmul.f32.gmra.mxu0 %v441
      %v1776 = vpop.f32.mrf.mxu0
      %v1777 = vadd.f32 0.0, %v1776
      %1778 = vmatmul.f32.gmra.mxu0 %v443
      %v1779 = vpop.f32.mrf.mxu0
      %v1780 = vadd.f32 0.0, %v1779
      %1781 = vmatmul.f32.gmra.mxu0 %v445
      %v1782 = vpop.f32.mrf.mxu0
      %v1783 = vadd.f32 0.0, %v1782
      %1784 = vmatmul.f32.gmra.mxu0 %v447
      %v1785 = vpop.f32.mrf.mxu0
      %v1786 = vadd.f32 0.0, %v1785
      %1787 = vmatmul.f32.gmra.mxu0 %v1205
      %v1788 = vpop.f32.mrf.mxu0
      %v1789 = vadd.f32 0.0, %v1788
      %1790 = vmatmul.f32.gmra.mxu0 %v1207
      %v1791 = vpop.f32.mrf.mxu0
      %v1792 = vadd.f32 0.0, %v1791
      %1793 = vmatmul.f32.gmra.mxu0 %v1680
      %v1794 = vpop.f32.mrf.mxu0
      %v1795 = vadd.f32 0.0, %v1794
      %1796 = vmatmul.f32.gmra.mxu0 %v1682
      %v1797 = vpop.f32.mrf.mxu0
      %v1798 = vadd.f32 0.0, %v1797
      %1799 = vdwg.mxu0
      %v1800 = vadd.f32 %v1640, %v1705
      %v1801 = vadd.f32 %v1641, %v1708
      %v1802 = vadd.f32 %v1642, %v1711
      %v1803 = vadd.f32 %v1643, %v1714
      %v1804 = vadd.f32 %v1644, %v1717
      %v1805 = vadd.f32 %v1645, %v1720
      %v1806 = vadd.f32 %v1646, %v1723
      %v1807 = vadd.f32 %v1647, %v1726
      %v1808 = vadd.f32 %v1648, %v1729
      %v1809 = vadd.f32 %v1649, %v1732
      %v1810 = vadd.f32 %v1650, %v1735
      %v1811 = vadd.f32 %v1651, %v1738
      %v1812 = vadd.f32 %v1652, %v1741
      %v1813 = vadd.f32 %v1653, %v1744
      %v1814 = vadd.f32 %v1654, %v1747
      %v1815 = vadd.f32 %v1655, %v1750
      %v1816 = vadd.f32 %v1656, %v1753
      %v1817 = vadd.f32 %v1657, %v1756
      %v1818 = vadd.f32 %v1658, %v1759
      %v1819 = vadd.f32 %v1659, %v1762
      %v1820 = vadd.f32 %v1660, %v1765
      %v1821 = vadd.f32 %v1661, %v1768
      %v1822 = vadd.f32 %v1662, %v1771
      %v1823 = vadd.f32 %v1663, %v1774
      %v1824 = vadd.f32 %v1664, %v1777
      %v1825 = vadd.f32 %v1665, %v1780
      %v1826 = vadd.f32 %v1666, %v1783
      %v1827 = vadd.f32 %v1667, %v1786
      %v1828 = vadd.f32 %v1668, %v1789
      %v1829 = vadd.f32 %v1669, %v1792
      %v1830 = vadd.f32 %v1670, %v1795
      %v1831 = vadd.f32 %v1671, %v1798
      %v1832 = vrot.slane %v249, 2
      %v1833 = vrot.slane %v250, 2
      %v1834 = vsel %vm746, %v1832, %v1833
      %v1835 = vrot.slane %v251, 2
      %v1836 = vsel %vm746, %v1833, %v1835
      %s1837 = scalar_lea.vmem %s1, 32
      %v1838 = vld [vmem:[%s1837] sm:$0xf]
      %v1839 = vsel %vm384, %v1834, 0
      %v1841 = vsel %vm384, %v1836, 0
      %v1844 = vsel %vm449, %v1838, 0
      %1846 = vmatpush.msra.mxu0 0.0
      %1847 = vmatpush.msra.mxu0 0.0
      %1848 = vmatpush.msra.mxu0 0.0
      %1849 = vmatpush.msra.mxu0 0.0
      %1850 = vmatpush.msra.mxu0 0.0
      %1851 = vmatpush.msra.mxu0 0.0
      %1852 = vmatpush.msra.mxu0 0.0
      %1853 = vmatpush.msra.mxu0 0.0
      %1854 = vmatpush.msra.mxu0 0.0
      %1855 = vmatpush.msra.mxu0 0.0
      %1856 = vmatpush.msra.mxu0 0.0
      %1857 = vmatpush.msra.mxu0 0.0
      %1858 = vmatpush.msra.mxu0 0.0
      %1859 = vmatpush.msra.mxu0 0.0
      %1860 = vmatpush.msra.mxu0 0.0
      %1861 = vmatpush.msra.mxu0 %v1844
      %1862 = vmatmul.f32.gmra.mxu0 %v837
      %v1863 = vpop.f32.mrf.mxu0
      %v1864 = vadd.f32 0.0, %v1863
      %1865 = vmatmul.f32.gmra.mxu0 %v839
      %v1866 = vpop.f32.mrf.mxu0
      %v1867 = vadd.f32 0.0, %v1866
      %1868 = vmatmul.f32.gmra.mxu0 %v841
      %v1869 = vpop.f32.mrf.mxu0
      %v1870 = vadd.f32 0.0, %v1869
      %1871 = vmatmul.f32.gmra.mxu0 %v843
      %v1872 = vpop.f32.mrf.mxu0
      %v1873 = vadd.f32 0.0, %v1872
      %1874 = vmatmul.f32.gmra.mxu0 %v845
      %v1875 = vpop.f32.mrf.mxu0
      %v1876 = vadd.f32 0.0, %v1875
      %1877 = vmatmul.f32.gmra.mxu0 %v847
      %v1878 = vpop.f32.mrf.mxu0
      %v1879 = vadd.f32 0.0, %v1878
      %1880 = vmatmul.f32.gmra.mxu0 %v849
      %v1881 = vpop.f32.mrf.mxu0
      %v1882 = vadd.f32 0.0, %v1881
      %1883 = vmatmul.f32.gmra.mxu0 %v851
      %v1884 = vpop.f32.mrf.mxu0
      %v1885 = vadd.f32 0.0, %v1884
      %1886 = vmatmul.f32.gmra.mxu0 %v853
      %v1887 = vpop.f32.mrf.mxu0
      %v1888 = vadd.f32 0.0, %v1887
      %1889 = vmatmul.f32.gmra.mxu0 %v855
      %v1890 = vpop.f32.mrf.mxu0
      %v1891 = vadd.f32 0.0, %v1890
      %1892 = vmatmul.f32.gmra.mxu0 %v857
      %v1893 = vpop.f32.mrf.mxu0
      %v1894 = vadd.f32 0.0, %v1893
      %1895 = vmatmul.f32.gmra.mxu0 %v859
      %v1896 = vpop.f32.mrf.mxu0
      %v1897 = vadd.f32 0.0, %v1896
      %1898 = vmatmul.f32.gmra.mxu0 %v861
      %v1899 = vpop.f32.mrf.mxu0
      %v1900 = vadd.f32 0.0, %v1899
      %1901 = vmatmul.f32.gmra.mxu0 %v863
      %v1902 = vpop.f32.mrf.mxu0
      %v1903 = vadd.f32 0.0, %v1902
      %1904 = vmatmul.f32.gmra.mxu0 %v865
      %v1905 = vpop.f32.mrf.mxu0
      %v1906 = vadd.f32 0.0, %v1905
      %1907 = vmatmul.f32.gmra.mxu0 %v867
      %v1908 = vpop.f32.mrf.mxu0
      %v1909 = vadd.f32 0.0, %v1908
      %1910 = vmatmul.f32.gmra.mxu0 %v869
      %v1911 = vpop.f32.mrf.mxu0
      %v1912 = vadd.f32 0.0, %v1911
      %1913 = vmatmul.f32.gmra.mxu0 %v871
      %v1914 = vpop.f32.mrf.mxu0
      %v1915 = vadd.f32 0.0, %v1914
      %1916 = vmatmul.f32.gmra.mxu0 %v873
      %v1917 = vpop.f32.mrf.mxu0
      %v1918 = vadd.f32 0.0, %v1917
      %1919 = vmatmul.f32.gmra.mxu0 %v875
      %v1920 = vpop.f32.mrf.mxu0
      %v1921 = vadd.f32 0.0, %v1920
      %1922 = vmatmul.f32.gmra.mxu0 %v877
      %v1923 = vpop.f32.mrf.mxu0
      %v1924 = vadd.f32 0.0, %v1923
      %1925 = vmatmul.f32.gmra.mxu0 %v879
      %v1926 = vpop.f32.mrf.mxu0
      %v1927 = vadd.f32 0.0, %v1926
      %1928 = vmatmul.f32.gmra.mxu0 %v881
      %v1929 = vpop.f32.mrf.mxu0
      %v1930 = vadd.f32 0.0, %v1929
      %1931 = vmatmul.f32.gmra.mxu0 %v883
      %v1932 = vpop.f32.mrf.mxu0
      %v1933 = vadd.f32 0.0, %v1932
      %1934 = vmatmul.f32.gmra.mxu0 %v885
      %v1935 = vpop.f32.mrf.mxu0
      %v1936 = vadd.f32 0.0, %v1935
      %1937 = vmatmul.f32.gmra.mxu0 %v887
      %v1938 = vpop.f32.mrf.mxu0
      %v1939 = vadd.f32 0.0, %v1938
      %1940 = vmatmul.f32.gmra.mxu0 %v889
      %v1941 = vpop.f32.mrf.mxu0
      %v1942 = vadd.f32 0.0, %v1941
      %1943 = vmatmul.f32.gmra.mxu0 %v891
      %v1944 = vpop.f32.mrf.mxu0
      %v1945 = vadd.f32 0.0, %v1944
      %1946 = vmatmul.f32.gmra.mxu0 %v1364
      %v1947 = vpop.f32.mrf.mxu0
      %v1948 = vadd.f32 0.0, %v1947
      %1949 = vmatmul.f32.gmra.mxu0 %v1366
      %v1950 = vpop.f32.mrf.mxu0
      %v1951 = vadd.f32 0.0, %v1950
      %1952 = vmatmul.f32.gmra.mxu0 %v1839
      %v1953 = vpop.f32.mrf.mxu0
      %v1954 = vadd.f32 0.0, %v1953
      %1955 = vmatmul.f32.gmra.mxu0 %v1841
      %v1956 = vpop.f32.mrf.mxu0
      %v1957 = vadd.f32 0.0, %v1956
      %1958 = vdwg.mxu0
      %v1959 = vadd.f32 %v1800, %v1864
      %v1960 = vadd.f32 %v1801, %v1867
      %v1961 = vadd.f32 %v1802, %v1870
      %v1962 = vadd.f32 %v1803, %v1873
      %v1963 = vadd.f32 %v1804, %v1876
      %v1964 = vadd.f32 %v1805, %v1879
      %v1965 = vadd.f32 %v1806, %v1882
      %v1966 = vadd.f32 %v1807, %v1885
      %v1967 = vadd.f32 %v1808, %v1888
      %v1968 = vadd.f32 %v1809, %v1891
      %v1969 = vadd.f32 %v1810, %v1894
      %v1970 = vadd.f32 %v1811, %v1897
      %v1971 = vadd.f32 %v1812, %v1900
      %v1972 = vadd.f32 %v1813, %v1903
      %v1973 = vadd.f32 %v1814, %v1906
      %v1974 = vadd.f32 %v1815, %v1909
      %v1975 = vadd.f32 %v1816, %v1912
      %v1976 = vadd.f32 %v1817, %v1915
      %v1977 = vadd.f32 %v1818, %v1918
      %v1978 = vadd.f32 %v1819, %v1921
      %v1979 = vadd.f32 %v1820, %v1924
      %v1980 = vadd.f32 %v1821, %v1927
      %v1981 = vadd.f32 %v1822, %v1930
      %v1982 = vadd.f32 %v1823, %v1933
      %v1983 = vadd.f32 %v1824, %v1936
      %v1984 = vadd.f32 %v1825, %v1939
      %v1985 = vadd.f32 %v1826, %v1942
      %v1986 = vadd.f32 %v1827, %v1945
      %v1987 = vadd.f32 %v1828, %v1948
      %v1988 = vadd.f32 %v1829, %v1951
      %v1989 = vadd.f32 %v1830, %v1954
      %v1990 = vadd.f32 %v1831, %v1957
      %v1991 = vld [vmem:[%s2] sm:$0x1]
      %v1993 = vperm.slane %v1991, 0
      %v1995 = vmul.f32 %v1959, %v1993
      %v1996 = vmul.f32 %v1960, %v1993
      %v1997 = vmul.f32 %v1961, %v1993
      %v1998 = vmul.f32 %v1962, %v1993
      %v1999 = vmul.f32 %v1963, %v1993
      %v2000 = vmul.f32 %v1964, %v1993
      %v2001 = vmul.f32 %v1965, %v1993
      %v2002 = vmul.f32 %v1966, %v1993
      %v2003 = vmul.f32 %v1967, %v1993
      %v2004 = vmul.f32 %v1968, %v1993
      %v2005 = vmul.f32 %v1969, %v1993
      %v2006 = vmul.f32 %v1970, %v1993
      %v2007 = vmul.f32 %v1971, %v1993
      %v2008 = vmul.f32 %v1972, %v1993
      %v2009 = vmul.f32 %v1973, %v1993
      %v2010 = vmul.f32 %v1974, %v1993
      %v2011 = vmul.f32 %v1975, %v1993
      %v2012 = vmul.f32 %v1976, %v1993
      %v2013 = vmul.f32 %v1977, %v1993
      %v2014 = vmul.f32 %v1978, %v1993
      %v2015 = vmul.f32 %v1979, %v1993
      %v2016 = vmul.f32 %v1980, %v1993
      %v2017 = vmul.f32 %v1981, %v1993
      %v2018 = vmul.f32 %v1982, %v1993
      %v2019 = vmul.f32 %v1983, %v1993
      %v2020 = vmul.f32 %v1984, %v1993
      %v2021 = vmul.f32 %v1985, %v1993
      %v2022 = vmul.f32 %v1986, %v1993
      %v2023 = vmul.f32 %v1987, %v1993
      %v2024 = vmul.f32 %v1988, %v1993
      %v2025 = vmul.f32 %v1989, %v1993
      %v2026 = vmul.f32 %v1990, %v1993
      %v2027 = vld [vmem:[%s3] sm:$0x1]
      %v2029 = vperm.slane %v2027, 0
      %v2031 = vadd.f32 %v1995, %v2029
      %v2032 = vadd.f32 %v1996, %v2029
      %v2033 = vadd.f32 %v1997, %v2029
      %v2034 = vadd.f32 %v1998, %v2029
      %v2035 = vadd.f32 %v1999, %v2029
      %v2036 = vadd.f32 %v2000, %v2029
      %v2037 = vadd.f32 %v2001, %v2029
      %v2038 = vadd.f32 %v2002, %v2029
      %v2039 = vadd.f32 %v2003, %v2029
      %v2040 = vadd.f32 %v2004, %v2029
      %v2041 = vadd.f32 %v2005, %v2029
      %v2042 = vadd.f32 %v2006, %v2029
      %v2043 = vadd.f32 %v2007, %v2029
      %v2044 = vadd.f32 %v2008, %v2029
      %v2045 = vadd.f32 %v2009, %v2029
      %v2046 = vadd.f32 %v2010, %v2029
      %v2047 = vadd.f32 %v2011, %v2029
      %v2048 = vadd.f32 %v2012, %v2029
      %v2049 = vadd.f32 %v2013, %v2029
      %v2050 = vadd.f32 %v2014, %v2029
      %v2051 = vadd.f32 %v2015, %v2029
      %v2052 = vadd.f32 %v2016, %v2029
      %v2053 = vadd.f32 %v2017, %v2029
      %v2054 = vadd.f32 %v2018, %v2029
      %v2055 = vadd.f32 %v2019, %v2029
      %v2056 = vadd.f32 %v2020, %v2029
      %v2057 = vadd.f32 %v2021, %v2029
      %v2058 = vadd.f32 %v2022, %v2029
      %v2059 = vadd.f32 %v2023, %v2029
      %v2060 = vadd.f32 %v2024, %v2029
      %v2061 = vadd.f32 %v2025, %v2029
      %v2062 = vadd.f32 %v2026, %v2029
      %v2063 = vmax.f32 %v2031, 0.0
      %v2064 = vmax.f32 %v2032, 0.0
      %v2065 = vmax.f32 %v2033, 0.0
      %v2066 = vmax.f32 %v2034, 0.0
      %v2067 = vmax.f32 %v2035, 0.0
      %v2068 = vmax.f32 %v2036, 0.0
      %v2069 = vmax.f32 %v2037, 0.0
      %v2070 = vmax.f32 %v2038, 0.0
      %v2071 = vmax.f32 %v2039, 0.0
      %v2072 = vmax.f32 %v2040, 0.0
      %v2073 = vmax.f32 %v2041, 0.0
      %v2074 = vmax.f32 %v2042, 0.0
      %v2075 = vmax.f32 %v2043, 0.0
      %v2076 = vmax.f32 %v2044, 0.0
      %v2077 = vmax.f32 %v2045, 0.0
      %v2078 = vmax.f32 %v2046, 0.0
      %v2079 = vmax.f32 %v2047, 0.0
      %v2080 = vmax.f32 %v2048, 0.0
      %v2081 = vmax.f32 %v2049, 0.0
      %v2082 = vmax.f32 %v2050, 0.0
      %v2083 = vmax.f32 %v2051, 0.0
      %v2084 = vmax.f32 %v2052, 0.0
      %v2085 = vmax.f32 %v2053, 0.0
      %v2086 = vmax.f32 %v2054, 0.0
      %v2087 = vmax.f32 %v2055, 0.0
      %v2088 = vmax.f32 %v2056, 0.0
      %v2089 = vmax.f32 %v2057, 0.0
      %v2090 = vmax.f32 %v2058, 0.0
      %v2091 = vmax.f32 %v2059, 0.0
      %v2092 = vmax.f32 %v2060, 0.0
      %v2093 = vmax.f32 %v2061, 0.0
      %v2094 = vmax.f32 %v2062, 0.0
      %vm2095 = vcmask 64512
      %2096 = vst.msk [vmem:[%s197] sm:$0xff] %vm2095, %v2063
      %2097 = vst.msk [vmem:[%s197 + $0x8] sm:$0xff] %vm2095, %v2064
      %2098 = vst.msk [vmem:[%s197 + $0x10] sm:$0xff] %vm2095, %v2065
      %2099 = vst.msk [vmem:[%s197 + $0x18] sm:$0xff] %vm2095, %v2066
      %2100 = vst.msk [vmem:[%s197 + $0x20] sm:$0xff] %vm2095, %v2067
      %2101 = vst.msk [vmem:[%s197 + $0x28] sm:$0xff] %vm2095, %v2068
      %2102 = vst.msk [vmem:[%s197 + $0x30] sm:$0xff] %vm2095, %v2069
      %2103 = vst.msk [vmem:[%s197 + $0x38] sm:$0xff] %vm2095, %v2070
      %2104 = vst.msk [vmem:[%s197 + $0x40] sm:$0xff] %vm2095, %v2071
      %2105 = vst.msk [vmem:[%s197 + $0x48] sm:$0xff] %vm2095, %v2072
      %2106 = vst.msk [vmem:[%s197 + $0x50] sm:$0xff] %vm2095, %v2073
      %2107 = vst.msk [vmem:[%s197 + $0x58] sm:$0xff] %vm2095, %v2074
      %2108 = vst.msk [vmem:[%s197 + $0x60] sm:$0xff] %vm2095, %v2075
      %2109 = vst.msk [vmem:[%s197 + $0x68] sm:$0xff] %vm2095, %v2076
      %2110 = vst.msk [vmem:[%s197 + $0x70] sm:$0xff] %vm2095, %v2077
      %2111 = vst.msk [vmem:[%s197 + $0x78] sm:$0xff] %vm2095, %v2078
      %2112 = vst.msk [vmem:[%s197 + $0x80] sm:$0xff] %vm2095, %v2079
      %2113 = vst.msk [vmem:[%s197 + $0x88] sm:$0xff] %vm2095, %v2080
      %2114 = vst.msk [vmem:[%s197 + $0x90] sm:$0xff] %vm2095, %v2081
      %2115 = vst.msk [vmem:[%s197 + $0x98] sm:$0xff] %vm2095, %v2082
      %2116 = vst.msk [vmem:[%s197 + $0xa0] sm:$0xff] %vm2095, %v2083
      %2117 = vst.msk [vmem:[%s197 + $0xa8] sm:$0xff] %vm2095, %v2084
      %2118 = vst.msk [vmem:[%s197 + $0xb0] sm:$0xff] %vm2095, %v2085
      %2119 = vst.msk [vmem:[%s197 + $0xb8] sm:$0xff] %vm2095, %v2086
      %2120 = vst.msk [vmem:[%s197 + $0xc0] sm:$0xff] %vm2095, %v2087
      %2121 = vst.msk [vmem:[%s197 + $0xc8] sm:$0xff] %vm2095, %v2088
      %2122 = vst.msk [vmem:[%s197 + $0xd0] sm:$0xff] %vm2095, %v2089
      %2123 = vst.msk [vmem:[%s197 + $0xd8] sm:$0xff] %vm2095, %v2090
      %2124 = vst.msk [vmem:[%s197 + $0xe0] sm:$0xff] %vm2095, %v2091
      %2125 = vst.msk [vmem:[%s197 + $0xe8] sm:$0xff] %vm2095, %v2092
      %2126 = vst.msk [vmem:[%s197 + $0xf0] sm:$0xff] %vm2095, %v2093
      %2127 = vst.msk [vmem:[%s197 + $0xf8] sm:$0xff] %vm2095, %v2094
      %p2128 = scmp.lt.s32.totalorder %s15, 1
      %s2129 = scalar_select %p2128, %s15, 1
      %s2130 = smul.addr %s2129, 32
      %s2131 = smul.addr %s2130, 8
      %s2132 = scalar_lea.vmem %s4, %s2131
      // Predicated region
      $region37: #{tpu_custom_call.1} parent=35 // pred_check
        %p2133 = pneg %p122
      $region38: #{tpu_custom_call.1} parent=35 // pred_check_branch
        %2135 = sbr.rel (%p2133) target = $region40
      $region39: #{tpu_custom_call.1} parent=35 // pred_region
        _
      $region40: #{tpu_custom_call.1} parent=35 // pred_fallthru
        _
    $region36: #{tpu_custom_call.1} parent=5 // pred_fallthru
      _
    %p2136 = scmp.le.s32.totalorder 2, %s10
    // Predicated region
    $region41: #{tpu_custom_call.1} parent=5 // pred_check
      %p2137 = pneg %p2136
    $region42: #{tpu_custom_call.1} parent=5 // pred_check_branch
      %2139 = sbr.rel (%p2137) target = $region44
    $region43: #{tpu_custom_call.1} parent=5 // pred_region
      %s2140 = ssub.s32 %s10, 2
      // Predicated region
      $region45: #{tpu_custom_call.1} parent=43 // pred_check
        %p2141 = pneg %p128
      $region46: #{tpu_custom_call.1} parent=43 // pred_check_branch
        %2143 = sbr.rel (%p2141) target = $region48
      $region47: #{tpu_custom_call.1} parent=43 // pred_region
        %p2144 = scmp.lt.s32.totalorder %s16, 1
        %s2145 = scalar_select %p2144, %s16, 1
        %s2146 = smul.addr %s2145, 32
        %s2147 = smul.addr %s2146, 8
        %s2148 = scalar_lea.vmem %s4, %s2147
      $region48: #{tpu_custom_call.1} parent=43 // pred_fallthru
        _
    $region44: #{tpu_custom_call.1} parent=5 // pred_fallthru
      _
  $region6: #{tpu_custom_call.1} parent=0 // loop_footer
    %s14 = sadd.s32 1, %s10
  $region7: #{tpu_custom_call.1} parent=0 // loop_footer_branch
    %9 = sbr.rel target = $region3
  $region8: #{tpu_custom_call.1} parent=0 // loop_exit
    _

</llo_original>
